<compile_context>
chip_gen: v7x
topology: tpu7x:2x2x1
jax: 0.10.0
libtpu: 0.0.40
codegen_flags: <defaults>
</compile_context>

<pallas_src>
import functools

import jax
import jax.numpy as jnp
from jax import lax
from jax.experimental import pallas as pl
from jax.experimental.pallas import tpu as pltpu


# ------------------------------ fused kernel ------------------------------- #

def _fused_predict_kernel(*refs, T, B, lstm_meta, lin_relu):
    """Whole LSTM.predict() in a single kernel invocation (all VMEM-resident).

    refs layout (in order):
      x_ref                          (T*B, D0)   time-major flattened input
      [wih, whh, b] per LSTM layer   (Din,4H), (H,4H), (1,4H)  gate order i,f,g,o
      [w, b] per Linear layer        (in,out), (1,out)
      out_ref                        (B, out_dim)
      seq_buf (scratch)              (T*B, maxH) inter-layer output sequence
    """
    n_lstm = len(lstm_meta)
    n_lin = len(lin_relu)
    x_ref = refs[0]
    pos = 1
    lstm_refs = []
    for _ in range(n_lstm):
        lstm_refs.append(tuple(refs[pos:pos + 3]))
        pos += 3
    lin_refs = []
    for _ in range(n_lin):
        lin_refs.append(tuple(refs[pos:pos + 2]))
        pos += 2
    out_ref = refs[pos]
    seq_buf = refs[pos + 1]

    h = None
    for li, (d_in, H, relu) in enumerate(lstm_meta):
        is_top = (li == n_lstm - 1)
        wih_ref, whh_ref, b_ref = lstm_refs[li]

        # ---- hoisted input projection (+ bias) for the whole sequence ------
        seq = x_ref[...] if li == 0 else seq_buf[:, :d_in]          # (T*B, Din)
        xw = (jnp.dot(seq, wih_ref[...], preferred_element_type=jnp.float32)
              + b_ref[...])                                          # (T*B, 4H)
        whh = whh_ref[...]                                           # (H, 4H) compact

        # ---- register-carried recurrent state, fully unrolled over T -------
        h = jnp.zeros((B, H), jnp.float32)
        c = jnp.zeros((B, 4 * H), jnp.float32)   # full lane width; lanes [0:H] hold the cell
        for t in range(T):                       # T is static -> full unroll
            g = xw[t * B:(t + 1) * B, :] + jnp.dot(
                h, whh, preferred_element_type=jnp.float32)          # (B, 4H)
            # Full-width activations (EUP) + lane alignment via rolls (XLU):
            #   g lanes = [ z_i | z_f | z_g | z_o ]
            sg = jax.nn.sigmoid(g)                                   # [s(i)|s(f)|s(g)|s(o)]
            th = jnp.tanh(g)                                         # [ .  | .  |t(g)| .  ]
            f0 = pltpu.roll(sg, shift=3 * H, axis=1)                 # lanes[0:H] = s(f)
            g0 = pltpu.roll(th, shift=2 * H, axis=1)                 # lanes[0:H] = t(g)
            o0 = pltpu.roll(sg, shift=1 * H, axis=1)                 # lanes[0:H] = s(o)
            c = f0 * c + sg * g0          # lanes[0:H] = new cell; other lanes bounded junk
            h_full = o0 * jnp.tanh(c)     # lanes[0:H] = new hidden
            h = h_full[:, :H]             # offset-0 slice (no rotate); raw h for recurrence
            if not is_top:
                out_t = jnp.maximum(h, 0.0) if relu else h
                seq_buf[t * B:(t + 1) * B, :H] = out_t
        if is_top and relu:
            h = jnp.maximum(h, 0.0)       # only the final timestep is consumed downstream

    # ---- Linear head on h_{T-1} only (dropout in eval mode is identity) ----
    y = h
    for i in range(n_lin):
        w_ref, b_ref = lin_refs[i]
        y = jnp.dot(y, w_ref[...], preferred_element_type=jnp.float32) + b_ref[...]
        if lin_relu[i]:
            y = jnp.maximum(y, 0.0)
    out_ref[...] = y.astype(out_ref.dtype)


# ------------------------------ wrapper ------------------------------------ #

_VMEM_SPEC = pl.BlockSpec(memory_space=pltpu.MemorySpace.VMEM)


def predict(params, x, cfg):
    """Equivalent of LSTM.predict(input_seqs, training=False), fully fused."""
    num_layers = eval(cfg.num_layers)
    B, T, D0 = x.shape

    lstm_meta = []
    flat_lstm = []
    for i in range(cfg.num_rnn):
        for l in range(num_layers[i]):
            wih_t, whh_t, bias = params["lstm"][i][l]
            d_in = wih_t.shape[0]
            H = whh_t.shape[0]
            # ReLU applies to each nn.LSTM block's output sequence only.
            relu = bool(cfg.activ) and (l == num_layers[i] - 1)
            lstm_meta.append((d_in, H, relu))
            flat_lstm += [wih_t, whh_t, bias]
    lin_relu = tuple(bool(cfg.activ) for _ in range(cfg.num_linear))
    flat_lin = []
    for i in range(cfg.num_linear):
        w_t, b = params["lin"][i]
        flat_lin += [w_t, b]
    out_dim = params["lin"][-1][0].shape[1]
    max_h = max(H for (_, H, _) in lstm_meta)

    # Single time-major transpose + flatten at model entry.
    x_tm = jnp.transpose(x, (1, 0, 2)).reshape(T * B, D0).astype(jnp.float32)

    # Advisory cost estimate so XLA schedules the fused call sensibly.
    flops = 0
    trans = 0
    for (d_in, H, _) in lstm_meta:
        flops += 2 * T * B * d_in * 4 * H + 2 * T * B * H * 4 * H
        trans += 3 * T * B * 4 * H
    for i in range(cfg.num_linear):
        w_t, _ = params["lin"][i]
        flops += 2 * B * w_t.shape[0] * w_t.shape[1]
    bytes_accessed = 4 * (x_tm.size
                          + sum(int(a.size) for a in flat_lstm + flat_lin)
                          + B * out_dim)

    kernel = functools.partial(_fused_predict_kernel, T=T, B=B,
                               lstm_meta=tuple(lstm_meta), lin_relu=lin_relu)
    args = [x_tm] + flat_lstm + flat_lin
    return pl.pallas_call(
        kernel,
        out_shape=jax.ShapeDtypeStruct((B, out_dim), jnp.float32),
        in_specs=[_VMEM_SPEC] * len(args),
        out_specs=_VMEM_SPEC,
        scratch_shapes=[pltpu.VMEM((T * B, max_h), jnp.float32)],
        cost_estimate=pl.CostEstimate(flops=flops, transcendentals=trans,
                                      bytes_accessed=bytes_accessed),
    )(*args)


# ------------------------------ model config ------------------------------- #

class Cfg:
    seq_len = 8
    num_rnn = 2
    num_layers = "[1, 1]"
    rnn_io = "[[16, 32], [32, 32]]"
    linear_io = "[[32, 32], [32, 10]]"
    num_linear = 2
    activ = True
    dropout = True  # F.dropout(training=False) is identity in predict()


def init_params(key, cfg, input_dim, output_dim):
    num_layers = eval(cfg.num_layers)
    rnn_io = eval(cfg.rnn_io)
    linear_io = eval(cfg.linear_io)
    params = {"lstm": [], "lin": []}
    for i in range(cfg.num_rnn):
        in_dim = input_dim if i == 0 else rnn_io[i][0]
        H = rnn_io[i][1]
        k = 1.0 / float(jnp.sqrt(float(H)))
        layers = []
        for l in range(num_layers[i]):
            d = in_dim if l == 0 else H
            key, k1, k2, k3, k4 = jax.random.split(key, 5)
            wih = jax.random.uniform(k1, (4 * H, d), jnp.float32, -k, k)
            whh = jax.random.uniform(k2, (4 * H, H), jnp.float32, -k, k)
            bih = jax.random.uniform(k3, (4 * H,), jnp.float32, -k, k)
            bhh = jax.random.uniform(k4, (4 * H,), jnp.float32, -k, k)
            layers.append((wih.T, whh.T, (bih + bhh)[None, :]))
        params["lstm"].append(layers)
    for i in range(cfg.num_linear):
        in_f = linear_io[i][0]
        out_f = output_dim if (output_dim is not None and i == cfg.num_linear - 1) \
            else linear_io[i][1]
        k = 1.0 / float(jnp.sqrt(float(in_f)))
        key, k1, k2 = jax.random.split(key, 3)
        w = jax.random.uniform(k1, (out_f, in_f), jnp.float32, -k, k)
        b = jax.random.uniform(k2, (out_f,), jnp.float32, -k, k)
        params["lin"].append((w.T, b[None, :]))
    return params


# ---------------------- Pure-JAX reference (for checking) ------------------ #

def _ref_lstm_layer(x, wih_t, whh_t, bias, apply_relu):
    B, _, _ = x.shape
    H = whh_t.shape[0]

    def step(carry, x_t):
        h, c = carry
        gates = x_t @ wih_t + h @ whh_t + bias
        i_g, f_g, g_g, o_g = jnp.split(gates, 4, axis=-1)
        c = jax.nn.sigmoid(f_g) * c + jax.nn.sigmoid(i_g) * jnp.tanh(g_g)
        h = jax.nn.sigmoid(o_g) * jnp.tanh(c)
        out = jnp.maximum(h, 0.0) if apply_relu else h
        return (h, c), out

    init = (jnp.zeros((B, H), jnp.float32), jnp.zeros((B, H), jnp.float32))
    _, outs = lax.scan(step, init, jnp.transpose(x, (1, 0, 2)))
    return jnp.transpose(outs, (1, 0, 2))


def _ref_predict(params, x, cfg):
    num_layers = eval(cfg.num_layers)
    h = x
    for i in range(cfg.num_rnn):
        for l in range(num_layers[i]):
            apply_relu = bool(cfg.activ) and (l == num_layers[i] - 1)
            wih_t, whh_t, bias = params["lstm"][i][l]
            h = _ref_lstm_layer(h, wih_t, whh_t, bias, apply_relu)
    h = h[:, -1, :]
    for i in range(cfg.num_linear):
        w_t, b = params["lin"][i]
        h = h @ w_t + b
        if cfg.activ:
            h = jnp.maximum(h, 0.0)
    return h


# --------------------------------- main ------------------------------------ #

if __name__ == "__main__":
    cfg = Cfg()
    input_dim, output_dim = 16, 10
    batch = 2

    key = jax.random.PRNGKey(0)
    kx, kp = jax.random.split(key)
    x = jax.random.normal(kx, (batch, cfg.seq_len, input_dim), jnp.float32)
    params = init_params(kp, cfg, input_dim, output_dim)

    predict_fn = jax.jit(functools.partial(predict, cfg=cfg))
    out = jax.block_until_ready(predict_fn(params, x))

    ref = _ref_predict(params, x, cfg)
    assert out.shape == (batch, output_dim), out.shape
    assert jnp.allclose(out, ref, atol=1e-4, rtol=1e-4), \
        f"max abs diff {jnp.max(jnp.abs(out - ref))}"

    print("KERNEL_OK")
</pallas_src>

<mosaic_0001>
module attributes {stable_mosaic.version = 11 : i64} {
  func.func @_fused_predict_kernel(%arg0: memref<16x16xf32, #tpu.memory_space<vmem>>, %arg1: memref<16x128xf32, #tpu.memory_space<vmem>>, %arg2: memref<32x128xf32, #tpu.memory_space<vmem>>, %arg3: memref<1x128xf32, #tpu.memory_space<vmem>>, %arg4: memref<32x128xf32, #tpu.memory_space<vmem>>, %arg5: memref<32x128xf32, #tpu.memory_space<vmem>>, %arg6: memref<1x128xf32, #tpu.memory_space<vmem>>, %arg7: memref<32x32xf32, #tpu.memory_space<vmem>>, %arg8: memref<1x32xf32, #tpu.memory_space<vmem>>, %arg9: memref<32x10xf32, #tpu.memory_space<vmem>>, %arg10: memref<1x10xf32, #tpu.memory_space<vmem>>, %arg11: memref<2x10xf32, #tpu.memory_space<vmem>>, %arg12: memref<16x32xf32, #tpu.memory_space<vmem>>) attributes {dimension_semantics = [], scalar_prefetch = 0 : i64, scratch_operands = 1 : i64, tpu.core_type = #tpu.core_type<tc>} {
    %c0 = arith.constant 0 : index
    %c0_0 = arith.constant 0 : index
    %0 = vector.load %arg0[%c0, %c0_0] : memref<16x16xf32, #tpu.memory_space<vmem>>, vector<16x16xf32>
    %c0_1 = arith.constant 0 : index
    %c0_2 = arith.constant 0 : index
    %1 = vector.load %arg1[%c0_1, %c0_2] : memref<16x128xf32, #tpu.memory_space<vmem>>, vector<16x128xf32>
    %cst = arith.constant dense<0.000000e+00> : vector<16x128xf32>
    %2 = tpu.matmul %0, %1, %cst {dimension_numbers = #tpu.dot_dimension_numbers<[1], [0], [0], [1], [0, 0, 1, 1], [], []>} : vector<16x16xf32>, vector<16x128xf32>, vector<16x128xf32> -> vector<16x128xf32>
    %c0_3 = arith.constant 0 : index
    %c0_4 = arith.constant 0 : index
    %3 = vector.load %arg3[%c0_3, %c0_4] : memref<1x128xf32, #tpu.memory_space<vmem>>, vector<1x128xf32>
    %4 = vector.broadcast %3 : vector<1x128xf32> to vector<16x128xf32>
    %5 = arith.addf %2, %4 : vector<16x128xf32>
    %c0_5 = arith.constant 0 : index
    %c0_6 = arith.constant 0 : index
    %6 = vector.load %arg2[%c0_5, %c0_6] : memref<32x128xf32, #tpu.memory_space<vmem>>, vector<32x128xf32>
    %cst_7 = arith.constant 0.000000e+00 : f32
    %7 = vector.broadcast %cst_7 : f32 to vector<2x32xf32>
    %cst_8 = arith.constant 0.000000e+00 : f32
    %8 = vector.broadcast %cst_8 : f32 to vector<2x128xf32>
    %9 = vector.extract_strided_slice %5 {offsets = [0, 0], sizes = [2, 128], strides = [1, 1]} : vector<16x128xf32> to vector<2x128xf32>
    %cst_9 = arith.constant dense<0.000000e+00> : vector<2x128xf32>
    %10 = tpu.matmul %7, %6, %cst_9 {dimension_numbers = #tpu.dot_dimension_numbers<[1], [0], [0], [1], [0, 0, 1, 1], [], []>} : vector<2x32xf32>, vector<32x128xf32>, vector<2x128xf32> -> vector<2x128xf32>
    %11 = arith.addf %9, %10 : vector<2x128xf32>
    %12 = arith.negf %11 : vector<2x128xf32>
    %13 = math.exp %12 : vector<2x128xf32>
    %cst_10 = arith.constant 1.000000e+00 : f32
    %14 = vector.broadcast %cst_10 : f32 to vector<2x128xf32>
    %15 = arith.addf %14, %13 : vector<2x128xf32>
    %16 = arith.divf %14, %15 : vector<2x128xf32>
    %17 = math.tanh %11 : vector<2x128xf32>
    %c96_i32 = arith.constant 96 : i32
    %18 = tpu.dynamic_rotate %16 by %c96_i32 dim 1 : vector<2x128xf32>, i32 -> vector<2x128xf32>
    %c64_i32 = arith.constant 64 : i32
    %19 = tpu.dynamic_rotate %17 by %c64_i32 dim 1 : vector<2x128xf32>, i32 -> vector<2x128xf32>
    %c32_i32 = arith.constant 32 : i32
    %20 = tpu.dynamic_rotate %16 by %c32_i32 dim 1 : vector<2x128xf32>, i32 -> vector<2x128xf32>
    %21 = arith.mulf %18, %8 : vector<2x128xf32>
    %22 = arith.mulf %16, %19 : vector<2x128xf32>
    %23 = arith.addf %21, %22 : vector<2x128xf32>
    %24 = math.tanh %23 : vector<2x128xf32>
    %25 = arith.mulf %20, %24 : vector<2x128xf32>
    %26 = vector.extract_strided_slice %25 {offsets = [0, 0], sizes = [2, 32], strides = [1, 1]} : vector<2x128xf32> to vector<2x32xf32>
    %cst_11 = arith.constant 0.000000e+00 : f32
    %27 = vector.broadcast %cst_11 : f32 to vector<2x32xf32>
    %28 = arith.maximumf %26, %27 : vector<2x32xf32>
    %c0_12 = arith.constant 0 : index
    %c0_13 = arith.constant 0 : index
    %29 = vector.load %arg12[%c0_12, %c0_13] : memref<16x32xf32, #tpu.memory_space<vmem>>, vector<2x32xf32>
    tpu.vector_store %arg12[%c0_12, %c0_13], %28 {strides = array<i32>} : memref<16x32xf32, #tpu.memory_space<vmem>>, vector<2x32xf32>,
    %30 = vector.extract_strided_slice %5 {offsets = [2, 0], sizes = [2, 128], strides = [1, 1]} : vector<16x128xf32> to vector<2x128xf32>
    %cst_14 = arith.constant dense<0.000000e+00> : vector<2x128xf32>
    %31 = tpu.matmul %26, %6, %cst_14 {dimension_numbers = #tpu.dot_dimension_numbers<[1], [0], [0], [1], [0, 0, 1, 1], [], []>} : vector<2x32xf32>, vector<32x128xf32>, vector<2x128xf32> -> vector<2x128xf32>
    %32 = arith.addf %30, %31 : vector<2x128xf32>
    %33 = arith.negf %32 : vector<2x128xf32>
    %34 = math.exp %33 : vector<2x128xf32>
    %cst_15 = arith.constant 1.000000e+00 : f32
    %35 = vector.broadcast %cst_15 : f32 to vector<2x128xf32>
    %36 = arith.addf %35, %34 : vector<2x128xf32>
    %37 = arith.divf %35, %36 : vector<2x128xf32>
    %38 = math.tanh %32 : vector<2x128xf32>
    %c96_i32_16 = arith.constant 96 : i32
    %39 = tpu.dynamic_rotate %37 by %c96_i32_16 dim 1 : vector<2x128xf32>, i32 -> vector<2x128xf32>
    %c64_i32_17 = arith.constant 64 : i32
    %40 = tpu.dynamic_rotate %38 by %c64_i32_17 dim 1 : vector<2x128xf32>, i32 -> vector<2x128xf32>
    %c32_i32_18 = arith.constant 32 : i32
    %41 = tpu.dynamic_rotate %37 by %c32_i32_18 dim 1 : vector<2x128xf32>, i32 -> vector<2x128xf32>
    %42 = arith.mulf %39, %23 : vector<2x128xf32>
    %43 = arith.mulf %37, %40 : vector<2x128xf32>
    %44 = arith.addf %42, %43 : vector<2x128xf32>
    %45 = math.tanh %44 : vector<2x128xf32>
    %46 = arith.mulf %41, %45 : vector<2x128xf32>
    %47 = vector.extract_strided_slice %46 {offsets = [0, 0], sizes = [2, 32], strides = [1, 1]} : vector<2x128xf32> to vector<2x32xf32>
    %cst_19 = arith.constant 0.000000e+00 : f32
    %48 = vector.broadcast %cst_19 : f32 to vector<2x32xf32>
    %49 = arith.maximumf %47, %48 : vector<2x32xf32>
    %c2 = arith.constant 2 : index
    %c0_20 = arith.constant 0 : index
    %50 = vector.load %arg12[%c2, %c0_20] : memref<16x32xf32, #tpu.memory_space<vmem>>, vector<2x32xf32>
    tpu.vector_store %arg12[%c2, %c0_20], %49 {strides = array<i32>} : memref<16x32xf32, #tpu.memory_space<vmem>>, vector<2x32xf32>,
    %51 = vector.extract_strided_slice %5 {offsets = [4, 0], sizes = [2, 128], strides = [1, 1]} : vector<16x128xf32> to vector<2x128xf32>
    %cst_21 = arith.constant dense<0.000000e+00> : vector<2x128xf32>
    %52 = tpu.matmul %47, %6, %cst_21 {dimension_numbers = #tpu.dot_dimension_numbers<[1], [0], [0], [1], [0, 0, 1, 1], [], []>} : vector<2x32xf32>, vector<32x128xf32>, vector<2x128xf32> -> vector<2x128xf32>
    %53 = arith.addf %51, %52 : vector<2x128xf32>
    %54 = arith.negf %53 : vector<2x128xf32>
    %55 = math.exp %54 : vector<2x128xf32>
    %cst_22 = arith.constant 1.000000e+00 : f32
    %56 = vector.broadcast %cst_22 : f32 to vector<2x128xf32>
    %57 = arith.addf %56, %55 : vector<2x128xf32>
    %58 = arith.divf %56, %57 : vector<2x128xf32>
    %59 = math.tanh %53 : vector<2x128xf32>
    %c96_i32_23 = arith.constant 96 : i32
    %60 = tpu.dynamic_rotate %58 by %c96_i32_23 dim 1 : vector<2x128xf32>, i32 -> vector<2x128xf32>
    %c64_i32_24 = arith.constant 64 : i32
    %61 = tpu.dynamic_rotate %59 by %c64_i32_24 dim 1 : vector<2x128xf32>, i32 -> vector<2x128xf32>
    %c32_i32_25 = arith.constant 32 : i32
    %62 = tpu.dynamic_rotate %58 by %c32_i32_25 dim 1 : vector<2x128xf32>, i32 -> vector<2x128xf32>
    %63 = arith.mulf %60, %44 : vector<2x128xf32>
    %64 = arith.mulf %58, %61 : vector<2x128xf32>
    %65 = arith.addf %63, %64 : vector<2x128xf32>
    %66 = math.tanh %65 : vector<2x128xf32>
    %67 = arith.mulf %62, %66 : vector<2x128xf32>
    %68 = vector.extract_strided_slice %67 {offsets = [0, 0], sizes = [2, 32], strides = [1, 1]} : vector<2x128xf32> to vector<2x32xf32>
    %cst_26 = arith.constant 0.000000e+00 : f32
    %69 = vector.broadcast %cst_26 : f32 to vector<2x32xf32>
    %70 = arith.maximumf %68, %69 : vector<2x32xf32>
    %c4 = arith.constant 4 : index
    %c0_27 = arith.constant 0 : index
    %71 = vector.load %arg12[%c4, %c0_27] : memref<16x32xf32, #tpu.memory_space<vmem>>, vector<2x32xf32>
    tpu.vector_store %arg12[%c4, %c0_27], %70 {strides = array<i32>} : memref<16x32xf32, #tpu.memory_space<vmem>>, vector<2x32xf32>,
    %72 = vector.extract_strided_slice %5 {offsets = [6, 0], sizes = [2, 128], strides = [1, 1]} : vector<16x128xf32> to vector<2x128xf32>
    %cst_28 = arith.constant dense<0.000000e+00> : vector<2x128xf32>
    %73 = tpu.matmul %68, %6, %cst_28 {dimension_numbers = #tpu.dot_dimension_numbers<[1], [0], [0], [1], [0, 0, 1, 1], [], []>} : vector<2x32xf32>, vector<32x128xf32>, vector<2x128xf32> -> vector<2x128xf32>
    %74 = arith.addf %72, %73 : vector<2x128xf32>
    %75 = arith.negf %74 : vector<2x128xf32>
    %76 = math.exp %75 : vector<2x128xf32>
    %cst_29 = arith.constant 1.000000e+00 : f32
    %77 = vector.broadcast %cst_29 : f32 to vector<2x128xf32>
    %78 = arith.addf %77, %76 : vector<2x128xf32>
    %79 = arith.divf %77, %78 : vector<2x128xf32>
    %80 = math.tanh %74 : vector<2x128xf32>
    %c96_i32_30 = arith.constant 96 : i32
    %81 = tpu.dynamic_rotate %79 by %c96_i32_30 dim 1 : vector<2x128xf32>, i32 -> vector<2x128xf32>
    %c64_i32_31 = arith.constant 64 : i32
    %82 = tpu.dynamic_rotate %80 by %c64_i32_31 dim 1 : vector<2x128xf32>, i32 -> vector<2x128xf32>
    %c32_i32_32 = arith.constant 32 : i32
    %83 = tpu.dynamic_rotate %79 by %c32_i32_32 dim 1 : vector<2x128xf32>, i32 -> vector<2x128xf32>
    %84 = arith.mulf %81, %65 : vector<2x128xf32>
    %85 = arith.mulf %79, %82 : vector<2x128xf32>
    %86 = arith.addf %84, %85 : vector<2x128xf32>
    %87 = math.tanh %86 : vector<2x128xf32>
    %88 = arith.mulf %83, %87 : vector<2x128xf32>
    %89 = vector.extract_strided_slice %88 {offsets = [0, 0], sizes = [2, 32], strides = [1, 1]} : vector<2x128xf32> to vector<2x32xf32>
    %cst_33 = arith.constant 0.000000e+00 : f32
    %90 = vector.broadcast %cst_33 : f32 to vector<2x32xf32>
    %91 = arith.maximumf %89, %90 : vector<2x32xf32>
    %c6 = arith.constant 6 : index
    %c0_34 = arith.constant 0 : index
    %92 = vector.load %arg12[%c6, %c0_34] : memref<16x32xf32, #tpu.memory_space<vmem>>, vector<2x32xf32>
    tpu.vector_store %arg12[%c6, %c0_34], %91 {strides = array<i32>} : memref<16x32xf32, #tpu.memory_space<vmem>>, vector<2x32xf32>,
    %93 = vector.extract_strided_slice %5 {offsets = [8, 0], sizes = [2, 128], strides = [1, 1]} : vector<16x128xf32> to vector<2x128xf32>
    %cst_35 = arith.constant dense<0.000000e+00> : vector<2x128xf32>
    %94 = tpu.matmul %89, %6, %cst_35 {dimension_numbers = #tpu.dot_dimension_numbers<[1], [0], [0], [1], [0, 0, 1, 1], [], []>} : vector<2x32xf32>, vector<32x128xf32>, vector<2x128xf32> -> vector<2x128xf32>
    %95 = arith.addf %93, %94 : vector<2x128xf32>
    %96 = arith.negf %95 : vector<2x128xf32>
    %97 = math.exp %96 : vector<2x128xf32>
    %cst_36 = arith.constant 1.000000e+00 : f32
    %98 = vector.broadcast %cst_36 : f32 to vector<2x128xf32>
    %99 = arith.addf %98, %97 : vector<2x128xf32>
    %100 = arith.divf %98, %99 : vector<2x128xf32>
    %101 = math.tanh %95 : vector<2x128xf32>
    %c96_i32_37 = arith.constant 96 : i32
    %102 = tpu.dynamic_rotate %100 by %c96_i32_37 dim 1 : vector<2x128xf32>, i32 -> vector<2x128xf32>
    %c64_i32_38 = arith.constant 64 : i32
    %103 = tpu.dynamic_rotate %101 by %c64_i32_38 dim 1 : vector<2x128xf32>, i32 -> vector<2x128xf32>
    %c32_i32_39 = arith.constant 32 : i32
    %104 = tpu.dynamic_rotate %100 by %c32_i32_39 dim 1 : vector<2x128xf32>, i32 -> vector<2x128xf32>
    %105 = arith.mulf %102, %86 : vector<2x128xf32>
    %106 = arith.mulf %100, %103 : vector<2x128xf32>
    %107 = arith.addf %105, %106 : vector<2x128xf32>
    %108 = math.tanh %107 : vector<2x128xf32>
    %109 = arith.mulf %104, %108 : vector<2x128xf32>
    %110 = vector.extract_strided_slice %109 {offsets = [0, 0], sizes = [2, 32], strides = [1, 1]} : vector<2x128xf32> to vector<2x32xf32>
    %cst_40 = arith.constant 0.000000e+00 : f32
    %111 = vector.broadcast %cst_40 : f32 to vector<2x32xf32>
    %112 = arith.maximumf %110, %111 : vector<2x32xf32>
    %c8 = arith.constant 8 : index
    %c0_41 = arith.constant 0 : index
    %113 = vector.load %arg12[%c8, %c0_41] : memref<16x32xf32, #tpu.memory_space<vmem>>, vector<2x32xf32>
    tpu.vector_store %arg12[%c8, %c0_41], %112 {strides = array<i32>} : memref<16x32xf32, #tpu.memory_space<vmem>>, vector<2x32xf32>,
    %114 = vector.extract_strided_slice %5 {offsets = [10, 0], sizes = [2, 128], strides = [1, 1]} : vector<16x128xf32> to vector<2x128xf32>
    %cst_42 = arith.constant dense<0.000000e+00> : vector<2x128xf32>
    %115 = tpu.matmul %110, %6, %cst_42 {dimension_numbers = #tpu.dot_dimension_numbers<[1], [0], [0], [1], [0, 0, 1, 1], [], []>} : vector<2x32xf32>, vector<32x128xf32>, vector<2x128xf32> -> vector<2x128xf32>
    %116 = arith.addf %114, %115 : vector<2x128xf32>
    %117 = arith.negf %116 : vector<2x128xf32>
    %118 = math.exp %117 : vector<2x128xf32>
    %cst_43 = arith.constant 1.000000e+00 : f32
    %119 = vector.broadcast %cst_43 : f32 to vector<2x128xf32>
    %120 = arith.addf %119, %118 : vector<2x128xf32>
    %121 = arith.divf %119, %120 : vector<2x128xf32>
    %122 = math.tanh %116 : vector<2x128xf32>
    %c96_i32_44 = arith.constant 96 : i32
    %123 = tpu.dynamic_rotate %121 by %c96_i32_44 dim 1 : vector<2x128xf32>, i32 -> vector<2x128xf32>
    %c64_i32_45 = arith.constant 64 : i32
    %124 = tpu.dynamic_rotate %122 by %c64_i32_45 dim 1 : vector<2x128xf32>, i32 -> vector<2x128xf32>
    %c32_i32_46 = arith.constant 32 : i32
    %125 = tpu.dynamic_rotate %121 by %c32_i32_46 dim 1 : vector<2x128xf32>, i32 -> vector<2x128xf32>
    %126 = arith.mulf %123, %107 : vector<2x128xf32>
    %127 = arith.mulf %121, %124 : vector<2x128xf32>
    %128 = arith.addf %126, %127 : vector<2x128xf32>
    %129 = math.tanh %128 : vector<2x128xf32>
    %130 = arith.mulf %125, %129 : vector<2x128xf32>
    %131 = vector.extract_strided_slice %130 {offsets = [0, 0], sizes = [2, 32], strides = [1, 1]} : vector<2x128xf32> to vector<2x32xf32>
    %cst_47 = arith.constant 0.000000e+00 : f32
    %132 = vector.broadcast %cst_47 : f32 to vector<2x32xf32>
    %133 = arith.maximumf %131, %132 : vector<2x32xf32>
    %c10 = arith.constant 10 : index
    %c0_48 = arith.constant 0 : index
    %134 = vector.load %arg12[%c10, %c0_48] : memref<16x32xf32, #tpu.memory_space<vmem>>, vector<2x32xf32>
    tpu.vector_store %arg12[%c10, %c0_48], %133 {strides = array<i32>} : memref<16x32xf32, #tpu.memory_space<vmem>>, vector<2x32xf32>,
    %135 = vector.extract_strided_slice %5 {offsets = [12, 0], sizes = [2, 128], strides = [1, 1]} : vector<16x128xf32> to vector<2x128xf32>
    %cst_49 = arith.constant dense<0.000000e+00> : vector<2x128xf32>
    %136 = tpu.matmul %131, %6, %cst_49 {dimension_numbers = #tpu.dot_dimension_numbers<[1], [0], [0], [1], [0, 0, 1, 1], [], []>} : vector<2x32xf32>, vector<32x128xf32>, vector<2x128xf32> -> vector<2x128xf32>
    %137 = arith.addf %135, %136 : vector<2x128xf32>
    %138 = arith.negf %137 : vector<2x128xf32>
    %139 = math.exp %138 : vector<2x128xf32>
    %cst_50 = arith.constant 1.000000e+00 : f32
    %140 = vector.broadcast %cst_50 : f32 to vector<2x128xf32>
    %141 = arith.addf %140, %139 : vector<2x128xf32>
    %142 = arith.divf %140, %141 : vector<2x128xf32>
    %143 = math.tanh %137 : vector<2x128xf32>
    %c96_i32_51 = arith.constant 96 : i32
    %144 = tpu.dynamic_rotate %142 by %c96_i32_51 dim 1 : vector<2x128xf32>, i32 -> vector<2x128xf32>
    %c64_i32_52 = arith.constant 64 : i32
    %145 = tpu.dynamic_rotate %143 by %c64_i32_52 dim 1 : vector<2x128xf32>, i32 -> vector<2x128xf32>
    %c32_i32_53 = arith.constant 32 : i32
    %146 = tpu.dynamic_rotate %142 by %c32_i32_53 dim 1 : vector<2x128xf32>, i32 -> vector<2x128xf32>
    %147 = arith.mulf %144, %128 : vector<2x128xf32>
    %148 = arith.mulf %142, %145 : vector<2x128xf32>
    %149 = arith.addf %147, %148 : vector<2x128xf32>
    %150 = math.tanh %149 : vector<2x128xf32>
    %151 = arith.mulf %146, %150 : vector<2x128xf32>
    %152 = vector.extract_strided_slice %151 {offsets = [0, 0], sizes = [2, 32], strides = [1, 1]} : vector<2x128xf32> to vector<2x32xf32>
    %cst_54 = arith.constant 0.000000e+00 : f32
    %153 = vector.broadcast %cst_54 : f32 to vector<2x32xf32>
    %154 = arith.maximumf %152, %153 : vector<2x32xf32>
    %c12 = arith.constant 12 : index
    %c0_55 = arith.constant 0 : index
    %155 = vector.load %arg12[%c12, %c0_55] : memref<16x32xf32, #tpu.memory_space<vmem>>, vector<2x32xf32>
    tpu.vector_store %arg12[%c12, %c0_55], %154 {strides = array<i32>} : memref<16x32xf32, #tpu.memory_space<vmem>>, vector<2x32xf32>,
    %156 = vector.extract_strided_slice %5 {offsets = [14, 0], sizes = [2, 128], strides = [1, 1]} : vector<16x128xf32> to vector<2x128xf32>
    %cst_56 = arith.constant dense<0.000000e+00> : vector<2x128xf32>
    %157 = tpu.matmul %152, %6, %cst_56 {dimension_numbers = #tpu.dot_dimension_numbers<[1], [0], [0], [1], [0, 0, 1, 1], [], []>} : vector<2x32xf32>, vector<32x128xf32>, vector<2x128xf32> -> vector<2x128xf32>
    %158 = arith.addf %156, %157 : vector<2x128xf32>
    %159 = arith.negf %158 : vector<2x128xf32>
    %160 = math.exp %159 : vector<2x128xf32>
    %cst_57 = arith.constant 1.000000e+00 : f32
    %161 = vector.broadcast %cst_57 : f32 to vector<2x128xf32>
    %162 = arith.addf %161, %160 : vector<2x128xf32>
    %163 = arith.divf %161, %162 : vector<2x128xf32>
    %164 = math.tanh %158 : vector<2x128xf32>
    %c96_i32_58 = arith.constant 96 : i32
    %165 = tpu.dynamic_rotate %163 by %c96_i32_58 dim 1 : vector<2x128xf32>, i32 -> vector<2x128xf32>
    %c64_i32_59 = arith.constant 64 : i32
    %166 = tpu.dynamic_rotate %164 by %c64_i32_59 dim 1 : vector<2x128xf32>, i32 -> vector<2x128xf32>
    %c32_i32_60 = arith.constant 32 : i32
    %167 = tpu.dynamic_rotate %163 by %c32_i32_60 dim 1 : vector<2x128xf32>, i32 -> vector<2x128xf32>
    %168 = arith.mulf %165, %149 : vector<2x128xf32>
    %169 = arith.mulf %163, %166 : vector<2x128xf32>
    %170 = arith.addf %168, %169 : vector<2x128xf32>
    %171 = math.tanh %170 : vector<2x128xf32>
    %172 = arith.mulf %167, %171 : vector<2x128xf32>
    %173 = vector.extract_strided_slice %172 {offsets = [0, 0], sizes = [2, 32], strides = [1, 1]} : vector<2x128xf32> to vector<2x32xf32>
    %cst_61 = arith.constant 0.000000e+00 : f32
    %174 = vector.broadcast %cst_61 : f32 to vector<2x32xf32>
    %175 = arith.maximumf %173, %174 : vector<2x32xf32>
    %c14 = arith.constant 14 : index
    %c0_62 = arith.constant 0 : index
    %176 = vector.load %arg12[%c14, %c0_62] : memref<16x32xf32, #tpu.memory_space<vmem>>, vector<2x32xf32>
    tpu.vector_store %arg12[%c14, %c0_62], %175 {strides = array<i32>} : memref<16x32xf32, #tpu.memory_space<vmem>>, vector<2x32xf32>,
    %c0_63 = arith.constant 0 : index
    %c0_64 = arith.constant 0 : index
    %177 = vector.load %arg12[%c0_63, %c0_64] : memref<16x32xf32, #tpu.memory_space<vmem>>, vector<16x32xf32>
    %c0_65 = arith.constant 0 : index
    %c0_66 = arith.constant 0 : index
    %178 = vector.load %arg4[%c0_65, %c0_66] : memref<32x128xf32, #tpu.memory_space<vmem>>, vector<32x128xf32>
    %cst_67 = arith.constant dense<0.000000e+00> : vector<16x128xf32>
    %179 = tpu.matmul %177, %178, %cst_67 {dimension_numbers = #tpu.dot_dimension_numbers<[1], [0], [0], [1], [0, 0, 1, 1], [], []>} : vector<16x32xf32>, vector<32x128xf32>, vector<16x128xf32> -> vector<16x128xf32>
    %c0_68 = arith.constant 0 : index
    %c0_69 = arith.constant 0 : index
    %180 = vector.load %arg6[%c0_68, %c0_69] : memref<1x128xf32, #tpu.memory_space<vmem>>, vector<1x128xf32>
    %181 = vector.broadcast %180 : vector<1x128xf32> to vector<16x128xf32>
    %182 = arith.addf %179, %181 : vector<16x128xf32>
    %c0_70 = arith.constant 0 : index
    %c0_71 = arith.constant 0 : index
    %183 = vector.load %arg5[%c0_70, %c0_71] : memref<32x128xf32, #tpu.memory_space<vmem>>, vector<32x128xf32>
    %cst_72 = arith.constant 0.000000e+00 : f32
    %184 = vector.broadcast %cst_72 : f32 to vector<2x32xf32>
    %cst_73 = arith.constant 0.000000e+00 : f32
    %185 = vector.broadcast %cst_73 : f32 to vector<2x128xf32>
    %186 = vector.extract_strided_slice %182 {offsets = [0, 0], sizes = [2, 128], strides = [1, 1]} : vector<16x128xf32> to vector<2x128xf32>
    %cst_74 = arith.constant dense<0.000000e+00> : vector<2x128xf32>
    %187 = tpu.matmul %184, %183, %cst_74 {dimension_numbers = #tpu.dot_dimension_numbers<[1], [0], [0], [1], [0, 0, 1, 1], [], []>} : vector<2x32xf32>, vector<32x128xf32>, vector<2x128xf32> -> vector<2x128xf32>
    %188 = arith.addf %186, %187 : vector<2x128xf32>
    %189 = arith.negf %188 : vector<2x128xf32>
    %190 = math.exp %189 : vector<2x128xf32>
    %cst_75 = arith.constant 1.000000e+00 : f32
    %191 = vector.broadcast %cst_75 : f32 to vector<2x128xf32>
    %192 = arith.addf %191, %190 : vector<2x128xf32>
    %193 = arith.divf %191, %192 : vector<2x128xf32>
    %194 = math.tanh %188 : vector<2x128xf32>
    %c96_i32_76 = arith.constant 96 : i32
    %195 = tpu.dynamic_rotate %193 by %c96_i32_76 dim 1 : vector<2x128xf32>, i32 -> vector<2x128xf32>
    %c64_i32_77 = arith.constant 64 : i32
    %196 = tpu.dynamic_rotate %194 by %c64_i32_77 dim 1 : vector<2x128xf32>, i32 -> vector<2x128xf32>
    %c32_i32_78 = arith.constant 32 : i32
    %197 = tpu.dynamic_rotate %193 by %c32_i32_78 dim 1 : vector<2x128xf32>, i32 -> vector<2x128xf32>
    %198 = arith.mulf %195, %185 : vector<2x128xf32>
    %199 = arith.mulf %193, %196 : vector<2x128xf32>
    %200 = arith.addf %198, %199 : vector<2x128xf32>
    %201 = math.tanh %200 : vector<2x128xf32>
    %202 = arith.mulf %197, %201 : vector<2x128xf32>
    %203 = vector.extract_strided_slice %202 {offsets = [0, 0], sizes = [2, 32], strides = [1, 1]} : vector<2x128xf32> to vector<2x32xf32>
    %204 = vector.extract_strided_slice %182 {offsets = [2, 0], sizes = [2, 128], strides = [1, 1]} : vector<16x128xf32> to vector<2x128xf32>
    %cst_79 = arith.constant dense<0.000000e+00> : vector<2x128xf32>
    %205 = tpu.matmul %203, %183, %cst_79 {dimension_numbers = #tpu.dot_dimension_numbers<[1], [0], [0], [1], [0, 0, 1, 1], [], []>} : vector<2x32xf32>, vector<32x128xf32>, vector<2x128xf32> -> vector<2x128xf32>
    %206 = arith.addf %204, %205 : vector<2x128xf32>
    %207 = arith.negf %206 : vector<2x128xf32>
    %208 = math.exp %207 : vector<2x128xf32>
    %cst_80 = arith.constant 1.000000e+00 : f32
    %209 = vector.broadcast %cst_80 : f32 to vector<2x128xf32>
    %210 = arith.addf %209, %208 : vector<2x128xf32>
    %211 = arith.divf %209, %210 : vector<2x128xf32>
    %212 = math.tanh %206 : vector<2x128xf32>
    %c96_i32_81 = arith.constant 96 : i32
    %213 = tpu.dynamic_rotate %211 by %c96_i32_81 dim 1 : vector<2x128xf32>, i32 -> vector<2x128xf32>
    %c64_i32_82 = arith.constant 64 : i32
    %214 = tpu.dynamic_rotate %212 by %c64_i32_82 dim 1 : vector<2x128xf32>, i32 -> vector<2x128xf32>
    %c32_i32_83 = arith.constant 32 : i32
    %215 = tpu.dynamic_rotate %211 by %c32_i32_83 dim 1 : vector<2x128xf32>, i32 -> vector<2x128xf32>
    %216 = arith.mulf %213, %200 : vector<2x128xf32>
    %217 = arith.mulf %211, %214 : vector<2x128xf32>
    %218 = arith.addf %216, %217 : vector<2x128xf32>
    %219 = math.tanh %218 : vector<2x128xf32>
    %220 = arith.mulf %215, %219 : vector<2x128xf32>
    %221 = vector.extract_strided_slice %220 {offsets = [0, 0], sizes = [2, 32], strides = [1, 1]} : vector<2x128xf32> to vector<2x32xf32>
    %222 = vector.extract_strided_slice %182 {offsets = [4, 0], sizes = [2, 128], strides = [1, 1]} : vector<16x128xf32> to vector<2x128xf32>
    %cst_84 = arith.constant dense<0.000000e+00> : vector<2x128xf32>
    %223 = tpu.matmul %221, %183, %cst_84 {dimension_numbers = #tpu.dot_dimension_numbers<[1], [0], [0], [1], [0, 0, 1, 1], [], []>} : vector<2x32xf32>, vector<32x128xf32>, vector<2x128xf32> -> vector<2x128xf32>
    %224 = arith.addf %222, %223 : vector<2x128xf32>
    %225 = arith.negf %224 : vector<2x128xf32>
    %226 = math.exp %225 : vector<2x128xf32>
    %cst_85 = arith.constant 1.000000e+00 : f32
    %227 = vector.broadcast %cst_85 : f32 to vector<2x128xf32>
    %228 = arith.addf %227, %226 : vector<2x128xf32>
    %229 = arith.divf %227, %228 : vector<2x128xf32>
    %230 = math.tanh %224 : vector<2x128xf32>
    %c96_i32_86 = arith.constant 96 : i32
    %231 = tpu.dynamic_rotate %229 by %c96_i32_86 dim 1 : vector<2x128xf32>, i32 -> vector<2x128xf32>
    %c64_i32_87 = arith.constant 64 : i32
    %232 = tpu.dynamic_rotate %230 by %c64_i32_87 dim 1 : vector<2x128xf32>, i32 -> vector<2x128xf32>
    %c32_i32_88 = arith.constant 32 : i32
    %233 = tpu.dynamic_rotate %229 by %c32_i32_88 dim 1 : vector<2x128xf32>, i32 -> vector<2x128xf32>
    %234 = arith.mulf %231, %218 : vector<2x128xf32>
    %235 = arith.mulf %229, %232 : vector<2x128xf32>
    %236 = arith.addf %234, %235 : vector<2x128xf32>
    %237 = math.tanh %236 : vector<2x128xf32>
    %238 = arith.mulf %233, %237 : vector<2x128xf32>
    %239 = vector.extract_strided_slice %238 {offsets = [0, 0], sizes = [2, 32], strides = [1, 1]} : vector<2x128xf32> to vector<2x32xf32>
    %240 = vector.extract_strided_slice %182 {offsets = [6, 0], sizes = [2, 128], strides = [1, 1]} : vector<16x128xf32> to vector<2x128xf32>
    %cst_89 = arith.constant dense<0.000000e+00> : vector<2x128xf32>
    %241 = tpu.matmul %239, %183, %cst_89 {dimension_numbers = #tpu.dot_dimension_numbers<[1], [0], [0], [1], [0, 0, 1, 1], [], []>} : vector<2x32xf32>, vector<32x128xf32>, vector<2x128xf32> -> vector<2x128xf32>
    %242 = arith.addf %240, %241 : vector<2x128xf32>
    %243 = arith.negf %242 : vector<2x128xf32>
    %244 = math.exp %243 : vector<2x128xf32>
    %cst_90 = arith.constant 1.000000e+00 : f32
    %245 = vector.broadcast %cst_90 : f32 to vector<2x128xf32>
    %246 = arith.addf %245, %244 : vector<2x128xf32>
    %247 = arith.divf %245, %246 : vector<2x128xf32>
    %248 = math.tanh %242 : vector<2x128xf32>
    %c96_i32_91 = arith.constant 96 : i32
    %249 = tpu.dynamic_rotate %247 by %c96_i32_91 dim 1 : vector<2x128xf32>, i32 -> vector<2x128xf32>
    %c64_i32_92 = arith.constant 64 : i32
    %250 = tpu.dynamic_rotate %248 by %c64_i32_92 dim 1 : vector<2x128xf32>, i32 -> vector<2x128xf32>
    %c32_i32_93 = arith.constant 32 : i32
    %251 = tpu.dynamic_rotate %247 by %c32_i32_93 dim 1 : vector<2x128xf32>, i32 -> vector<2x128xf32>
    %252 = arith.mulf %249, %236 : vector<2x128xf32>
    %253 = arith.mulf %247, %250 : vector<2x128xf32>
    %254 = arith.addf %252, %253 : vector<2x128xf32>
    %255 = math.tanh %254 : vector<2x128xf32>
    %256 = arith.mulf %251, %255 : vector<2x128xf32>
    %257 = vector.extract_strided_slice %256 {offsets = [0, 0], sizes = [2, 32], strides = [1, 1]} : vector<2x128xf32> to vector<2x32xf32>
    %258 = vector.extract_strided_slice %182 {offsets = [8, 0], sizes = [2, 128], strides = [1, 1]} : vector<16x128xf32> to vector<2x128xf32>
    %cst_94 = arith.constant dense<0.000000e+00> : vector<2x128xf32>
    %259 = tpu.matmul %257, %183, %cst_94 {dimension_numbers = #tpu.dot_dimension_numbers<[1], [0], [0], [1], [0, 0, 1, 1], [], []>} : vector<2x32xf32>, vector<32x128xf32>, vector<2x128xf32> -> vector<2x128xf32>
    %260 = arith.addf %258, %259 : vector<2x128xf32>
    %261 = arith.negf %260 : vector<2x128xf32>
    %262 = math.exp %261 : vector<2x128xf32>
    %cst_95 = arith.constant 1.000000e+00 : f32
    %263 = vector.broadcast %cst_95 : f32 to vector<2x128xf32>
    %264 = arith.addf %263, %262 : vector<2x128xf32>
    %265 = arith.divf %263, %264 : vector<2x128xf32>
    %266 = math.tanh %260 : vector<2x128xf32>
    %c96_i32_96 = arith.constant 96 : i32
    %267 = tpu.dynamic_rotate %265 by %c96_i32_96 dim 1 : vector<2x128xf32>, i32 -> vector<2x128xf32>
    %c64_i32_97 = arith.constant 64 : i32
    %268 = tpu.dynamic_rotate %266 by %c64_i32_97 dim 1 : vector<2x128xf32>, i32 -> vector<2x128xf32>
    %c32_i32_98 = arith.constant 32 : i32
    %269 = tpu.dynamic_rotate %265 by %c32_i32_98 dim 1 : vector<2x128xf32>, i32 -> vector<2x128xf32>
    %270 = arith.mulf %267, %254 : vector<2x128xf32>
    %271 = arith.mulf %265, %268 : vector<2x128xf32>
    %272 = arith.addf %270, %271 : vector<2x128xf32>
    %273 = math.tanh %272 : vector<2x128xf32>
    %274 = arith.mulf %269, %273 : vector<2x128xf32>
    %275 = vector.extract_strided_slice %274 {offsets = [0, 0], sizes = [2, 32], strides = [1, 1]} : vector<2x128xf32> to vector<2x32xf32>
    %276 = vector.extract_strided_slice %182 {offsets = [10, 0], sizes = [2, 128], strides = [1, 1]} : vector<16x128xf32> to vector<2x128xf32>
    %cst_99 = arith.constant dense<0.000000e+00> : vector<2x128xf32>
    %277 = tpu.matmul %275, %183, %cst_99 {dimension_numbers = #tpu.dot_dimension_numbers<[1], [0], [0], [1], [0, 0, 1, 1], [], []>} : vector<2x32xf32>, vector<32x128xf32>, vector<2x128xf32> -> vector<2x128xf32>
    %278 = arith.addf %276, %277 : vector<2x128xf32>
    %279 = arith.negf %278 : vector<2x128xf32>
    %280 = math.exp %279 : vector<2x128xf32>
    %cst_100 = arith.constant 1.000000e+00 : f32
    %281 = vector.broadcast %cst_100 : f32 to vector<2x128xf32>
    %282 = arith.addf %281, %280 : vector<2x128xf32>
    %283 = arith.divf %281, %282 : vector<2x128xf32>
    %284 = math.tanh %278 : vector<2x128xf32>
    %c96_i32_101 = arith.constant 96 : i32
    %285 = tpu.dynamic_rotate %283 by %c96_i32_101 dim 1 : vector<2x128xf32>, i32 -> vector<2x128xf32>
    %c64_i32_102 = arith.constant 64 : i32
    %286 = tpu.dynamic_rotate %284 by %c64_i32_102 dim 1 : vector<2x128xf32>, i32 -> vector<2x128xf32>
    %c32_i32_103 = arith.constant 32 : i32
    %287 = tpu.dynamic_rotate %283 by %c32_i32_103 dim 1 : vector<2x128xf32>, i32 -> vector<2x128xf32>
    %288 = arith.mulf %285, %272 : vector<2x128xf32>
    %289 = arith.mulf %283, %286 : vector<2x128xf32>
    %290 = arith.addf %288, %289 : vector<2x128xf32>
    %291 = math.tanh %290 : vector<2x128xf32>
    %292 = arith.mulf %287, %291 : vector<2x128xf32>
    %293 = vector.extract_strided_slice %292 {offsets = [0, 0], sizes = [2, 32], strides = [1, 1]} : vector<2x128xf32> to vector<2x32xf32>
    %294 = vector.extract_strided_slice %182 {offsets = [12, 0], sizes = [2, 128], strides = [1, 1]} : vector<16x128xf32> to vector<2x128xf32>
    %cst_104 = arith.constant dense<0.000000e+00> : vector<2x128xf32>
    %295 = tpu.matmul %293, %183, %cst_104 {dimension_numbers = #tpu.dot_dimension_numbers<[1], [0], [0], [1], [0, 0, 1, 1], [], []>} : vector<2x32xf32>, vector<32x128xf32>, vector<2x128xf32> -> vector<2x128xf32>
    %296 = arith.addf %294, %295 : vector<2x128xf32>
    %297 = arith.negf %296 : vector<2x128xf32>
    %298 = math.exp %297 : vector<2x128xf32>
    %cst_105 = arith.constant 1.000000e+00 : f32
    %299 = vector.broadcast %cst_105 : f32 to vector<2x128xf32>
    %300 = arith.addf %299, %298 : vector<2x128xf32>
    %301 = arith.divf %299, %300 : vector<2x128xf32>
    %302 = math.tanh %296 : vector<2x128xf32>
    %c96_i32_106 = arith.constant 96 : i32
    %303 = tpu.dynamic_rotate %301 by %c96_i32_106 dim 1 : vector<2x128xf32>, i32 -> vector<2x128xf32>
    %c64_i32_107 = arith.constant 64 : i32
    %304 = tpu.dynamic_rotate %302 by %c64_i32_107 dim 1 : vector<2x128xf32>, i32 -> vector<2x128xf32>
    %c32_i32_108 = arith.constant 32 : i32
    %305 = tpu.dynamic_rotate %301 by %c32_i32_108 dim 1 : vector<2x128xf32>, i32 -> vector<2x128xf32>
    %306 = arith.mulf %303, %290 : vector<2x128xf32>
    %307 = arith.mulf %301, %304 : vector<2x128xf32>
    %308 = arith.addf %306, %307 : vector<2x128xf32>
    %309 = math.tanh %308 : vector<2x128xf32>
    %310 = arith.mulf %305, %309 : vector<2x128xf32>
    %311 = vector.extract_strided_slice %310 {offsets = [0, 0], sizes = [2, 32], strides = [1, 1]} : vector<2x128xf32> to vector<2x32xf32>
    %312 = vector.extract_strided_slice %182 {offsets = [14, 0], sizes = [2, 128], strides = [1, 1]} : vector<16x128xf32> to vector<2x128xf32>
    %cst_109 = arith.constant dense<0.000000e+00> : vector<2x128xf32>
    %313 = tpu.matmul %311, %183, %cst_109 {dimension_numbers = #tpu.dot_dimension_numbers<[1], [0], [0], [1], [0, 0, 1, 1], [], []>} : vector<2x32xf32>, vector<32x128xf32>, vector<2x128xf32> -> vector<2x128xf32>
    %314 = arith.addf %312, %313 : vector<2x128xf32>
    %315 = arith.negf %314 : vector<2x128xf32>
    %316 = math.exp %315 : vector<2x128xf32>
    %cst_110 = arith.constant 1.000000e+00 : f32
    %317 = vector.broadcast %cst_110 : f32 to vector<2x128xf32>
    %318 = arith.addf %317, %316 : vector<2x128xf32>
    %319 = arith.divf %317, %318 : vector<2x128xf32>
    %320 = math.tanh %314 : vector<2x128xf32>
    %c96_i32_111 = arith.constant 96 : i32
    %321 = tpu.dynamic_rotate %319 by %c96_i32_111 dim 1 : vector<2x128xf32>, i32 -> vector<2x128xf32>
    %c64_i32_112 = arith.constant 64 : i32
    %322 = tpu.dynamic_rotate %320 by %c64_i32_112 dim 1 : vector<2x128xf32>, i32 -> vector<2x128xf32>
    %c32_i32_113 = arith.constant 32 : i32
    %323 = tpu.dynamic_rotate %319 by %c32_i32_113 dim 1 : vector<2x128xf32>, i32 -> vector<2x128xf32>
    %324 = arith.mulf %321, %308 : vector<2x128xf32>
    %325 = arith.mulf %319, %322 : vector<2x128xf32>
    %326 = arith.addf %324, %325 : vector<2x128xf32>
    %327 = math.tanh %326 : vector<2x128xf32>
    %328 = arith.mulf %323, %327 : vector<2x128xf32>
    %329 = vector.extract_strided_slice %328 {offsets = [0, 0], sizes = [2, 32], strides = [1, 1]} : vector<2x128xf32> to vector<2x32xf32>
    %cst_114 = arith.constant 0.000000e+00 : f32
    %330 = vector.broadcast %cst_114 : f32 to vector<2x32xf32>
    %331 = arith.maximumf %329, %330 : vector<2x32xf32>
    %c0_115 = arith.constant 0 : index
    %c0_116 = arith.constant 0 : index
    %332 = vector.load %arg7[%c0_115, %c0_116] : memref<32x32xf32, #tpu.memory_space<vmem>>, vector<32x32xf32>
    %cst_117 = arith.constant dense<0.000000e+00> : vector<2x32xf32>
    %333 = tpu.matmul %331, %332, %cst_117 {dimension_numbers = #tpu.dot_dimension_numbers<[1], [0], [0], [1], [0, 0, 1, 1], [], []>} : vector<2x32xf32>, vector<32x32xf32>, vector<2x32xf32> -> vector<2x32xf32>
    %c0_118 = arith.constant 0 : index
    %c0_119 = arith.constant 0 : index
    %334 = vector.load %arg8[%c0_118, %c0_119] : memref<1x32xf32, #tpu.memory_space<vmem>>, vector<1x32xf32>
    %335 = vector.broadcast %334 : vector<1x32xf32> to vector<2x32xf32>
    %336 = arith.addf %333, %335 : vector<2x32xf32>
    %cst_120 = arith.constant 0.000000e+00 : f32
    %337 = vector.broadcast %cst_120 : f32 to vector<2x32xf32>
    %338 = arith.maximumf %336, %337 : vector<2x32xf32>
    %c0_121 = arith.constant 0 : index
    %c0_122 = arith.constant 0 : index
    %339 = vector.load %arg9[%c0_121, %c0_122] : memref<32x10xf32, #tpu.memory_space<vmem>>, vector<32x10xf32>
    %cst_123 = arith.constant dense<0.000000e+00> : vector<2x10xf32>
    %340 = tpu.matmul %338, %339, %cst_123 {dimension_numbers = #tpu.dot_dimension_numbers<[1], [0], [0], [1], [0, 0, 1, 1], [], []>} : vector<2x32xf32>, vector<32x10xf32>, vector<2x10xf32> -> vector<2x10xf32>
    %c0_124 = arith.constant 0 : index
    %c0_125 = arith.constant 0 : index
    %341 = vector.load %arg10[%c0_124, %c0_125] : memref<1x10xf32, #tpu.memory_space<vmem>>, vector<1x10xf32>
    %342 = vector.broadcast %341 : vector<1x10xf32> to vector<2x10xf32>
    %343 = arith.addf %340, %342 : vector<2x10xf32>
    %cst_126 = arith.constant 0.000000e+00 : f32
    %344 = vector.broadcast %cst_126 : f32 to vector<2x10xf32>
    %345 = arith.maximumf %343, %344 : vector<2x10xf32>
    %c0_127 = arith.constant 0 : index
    %c0_128 = arith.constant 0 : index
    %346 = vector.load %arg11[%c0_127, %c0_128] : memref<2x10xf32, #tpu.memory_space<vmem>>, vector<2x10xf32>
    tpu.vector_store %arg11[%c0_127, %c0_128], %345 {strides = array<i32>} : memref<2x10xf32, #tpu.memory_space<vmem>>, vector<2x10xf32>,
    return
  }
}

</mosaic_0001>

<llo_original>
// kernel: predict.1
$region0: #{predict.1}
  #allocation0 [shape = 'u32[]', space=smem, size = 0x4, offset = 0x4, fixed_abs, tag = 'smem constant byte address 0x4 - core index']
  #allocation1 [shape = 'u32[144,128]{1,0:T(1,128)}', space=vmem, size = 0x12000, scoped, tag = 'internal scratch']
  #allocation2 [shape = 'f32[16,32]{1,0:T(8,128)}', space=vmem, size = 0x2000, scoped, tag = 'scratch operand']
  %s0 = inlined_call_operand.vmem [shape: f32[16,16], index: 0, kind: input, shape index: {}]
  %s1 = inlined_call_operand.hbm [shape: f32[16,128], index: 1, kind: input, shape index: {}]
  %s2 = inlined_call_operand.vmem [shape: f32[32,128], index: 2, kind: input, shape index: {}]
  %s3 = inlined_call_operand.vmem [shape: f32[1,128], index: 3, kind: input, shape index: {}]
  %s4 = inlined_call_operand.vmem [shape: f32[32,128], index: 4, kind: input, shape index: {}]
  %s5 = inlined_call_operand.vmem [shape: f32[32,128], index: 5, kind: input, shape index: {}]
  %s6 = inlined_call_operand.vmem [shape: f32[1,128], index: 6, kind: input, shape index: {}]
  %s7 = inlined_call_operand.hbm [shape: f32[32,32], index: 7, kind: input, shape index: {}]
  %s8 = inlined_call_operand.hbm [shape: f32[1,32], index: 8, kind: input, shape index: {}]
  %s9 = inlined_call_operand.vmem [shape: f32[32,10], index: 9, kind: input, shape index: {}]
  %s10 = inlined_call_operand.hbm [shape: f32[1,10], index: 10, kind: input, shape index: {}]
  %s11 = inlined_call_operand.hbm [shape: f32[2,10], index: 11, kind: output, shape index: {}]
  %s12 = sld [smem:[#allocation0]]
  $region70: #{predict.1} parent=0
    _
  %s14 = ssub.s32 1, %s12
  %s15 = scalar_select 0, %s14, %s12
  $region1: #{predict.1} parent=0
    #allocation3 [shape = 'u8[8192]{0}', space=vmem, size = 0x2000, scoped, tag = 'input window, operand 1, single buffered']
    #allocation4 [shape = 's32[1]{0}', space=sflag, size = 0x4, scoped, tag = 'scoped memory for predict.1']
    #allocation5 [shape = 's32[1]{0}', space=sflag, size = 0x4, scoped, tag = 'scoped memory for predict.1']
    #allocation6 [shape = 'u8[16384]{0}', space=vmem, size = 0x4000, scoped, tag = 'input window, operand 7, single buffered']
    #allocation7 [shape = 's32[1]{0}', space=sflag, size = 0x4, scoped, tag = 'scoped memory for predict.1']
    #allocation8 [shape = 'u8[512]{0}', space=vmem, size = 0x400, scoped, tag = 'input window, operand 8, single buffered']
    #allocation9 [shape = 'u8[512]{0}', space=vmem, size = 0x400, scoped, tag = 'input window, operand 10, single buffered']
    #allocation10 [shape = 's32[1]{0}', space=sflag, size = 0x4, scoped, tag = 'scoped memory for predict.1']
    #allocation11 [shape = 'u8[1024]{0}', space=vmem, size = 0x400, scoped, tag = 'output window, operand 0, single buffered']
    %16 = vsyncpa [#allocation4], 0
    %17 = vsyncpa [#allocation7], 0
    %18 = vsyncpa [#allocation10], 0
    %19 = vsyncpa [#allocation5], 0
    // Predicated region
    $region2: #{predict.1} parent=1 // pred_check
      _
    $region3: #{predict.1} parent=1 // pred_check_branch
      %21 = sbr.rel (0) target = $region5
    $region4: #{predict.1} parent=1 // pred_region
      _
    $region5: #{predict.1} parent=1 // pred_fallthru
      _
    // Predicated region
    $region6: #{predict.1} parent=1 // pred_check
      _
    $region7: #{predict.1} parent=1 // pred_check_branch
      %23 = sbr.rel (0) target = $region9
    $region8: #{predict.1} parent=1 // pred_region
      %s25 = ssub.s32 256, 256
      %26 = vsyncadd [#allocation4], %s25
      %s27 = sshll.u32 [#allocation3], 4
      %s28 = int_to_ptr.vmem [resolvable:$true] %s27
      %33 = dma.hbm_to_vmem [thread:$0]  %s1, 256, %s28, [#allocation4], 128, 128, 8
    $region9: #{predict.1} parent=1 // pred_fallthru
      _
    // Predicated region
    $region10: #{predict.1} parent=1 // pred_check
      _
    $region11: #{predict.1} parent=1 // pred_check_branch
      %35 = sbr.rel (0) target = $region13
    $region12: #{predict.1} parent=1 // pred_region
      _
    $region13: #{predict.1} parent=1 // pred_fallthru
      _
    // Predicated region
    $region14: #{predict.1} parent=1 // pred_check
      _
    $region15: #{predict.1} parent=1 // pred_check_branch
      %37 = sbr.rel (0) target = $region17
    $region16: #{predict.1} parent=1 // pred_region
      _
    $region17: #{predict.1} parent=1 // pred_fallthru
      _
    // Predicated region
    $region18: #{predict.1} parent=1 // pred_check
      _
    $region19: #{predict.1} parent=1 // pred_check_branch
      %39 = sbr.rel (0) target = $region21
    $region20: #{predict.1} parent=1 // pred_region
      _
    $region21: #{predict.1} parent=1 // pred_fallthru
      _
    // Predicated region
    $region22: #{predict.1} parent=1 // pred_check
      _
    $region23: #{predict.1} parent=1 // pred_check_branch
      %41 = sbr.rel (0) target = $region25
    $region24: #{predict.1} parent=1 // pred_region
      _
    $region25: #{predict.1} parent=1 // pred_fallthru
      _
    // Predicated region
    $region26: #{predict.1} parent=1 // pred_check
      _
    $region27: #{predict.1} parent=1 // pred_check_branch
      %43 = sbr.rel (0) target = $region29
    $region28: #{predict.1} parent=1 // pred_region
      _
    $region29: #{predict.1} parent=1 // pred_fallthru
      _
    // Predicated region
    $region30: #{predict.1} parent=1 // pred_check
      _
    $region31: #{predict.1} parent=1 // pred_check_branch
      %45 = sbr.rel (0) target = $region33
    $region32: #{predict.1} parent=1 // pred_region
      %s47 = ssub.s32 512, 512
      %48 = vsyncadd [#allocation7], %s47
      %s49 = sshll.u32 [#allocation6], 4
      %s50 = int_to_ptr.vmem [resolvable:$true] %s49
      %55 = dma.hbm_to_vmem [thread:$0]  %s7, 512, %s50, [#allocation7], 128, 128, 8
    $region33: #{predict.1} parent=1 // pred_fallthru
      _
    // Predicated region
    $region34: #{predict.1} parent=1 // pred_check
      _
    $region35: #{predict.1} parent=1 // pred_check_branch
      %57 = sbr.rel (0) target = $region37
    $region36: #{predict.1} parent=1 // pred_region
      %s59 = ssub.s32 16, 16
      %60 = vsyncadd [#allocation7], %s59
      %s62 = sshll.u32 [#allocation8], 4
      %s63 = int_to_ptr.vmem [resolvable:$true] %s62
      %65 = dma.hbm_to_vmem [thread:$0]  %s8, 16, %s63, [#allocation7]
    $region37: #{predict.1} parent=1 // pred_fallthru
      _
    // Predicated region
    $region38: #{predict.1} parent=1 // pred_check
      _
    $region39: #{predict.1} parent=1 // pred_check_branch
      %67 = sbr.rel (0) target = $region41
    $region40: #{predict.1} parent=1 // pred_region
      _
    $region41: #{predict.1} parent=1 // pred_fallthru
      _
    // Predicated region
    $region42: #{predict.1} parent=1 // pred_check
      _
    $region43: #{predict.1} parent=1 // pred_check_branch
      %69 = sbr.rel (0) target = $region45
    $region44: #{predict.1} parent=1 // pred_region
      %s71 = ssub.s32 16, 16
      %72 = vsyncadd [#allocation10], %s71
      %s74 = sshll.u32 [#allocation9], 4
      %s75 = int_to_ptr.vmem [resolvable:$true] %s74
      %77 = dma.hbm_to_vmem [thread:$0]  %s10, 16, %s75, [#allocation10]
    $region45: #{predict.1} parent=1 // pred_fallthru
      _
    // Predicated region
    $region46: #{predict.1} parent=1 // pred_check
      _
    $region47: #{predict.1} parent=1 // pred_check_branch
      %79 = sbr.rel (0) target = $region49
    $region48: #{predict.1} parent=1 // pred_region
      %80 = dma.done [#allocation4], 256
    $region49: #{predict.1} parent=1 // pred_fallthru
      _
    // Predicated region
    $region50: #{predict.1} parent=1 // pred_check
      _
    $region51: #{predict.1} parent=1 // pred_check_branch
      %82 = sbr.rel (0) target = $region53
    $region52: #{predict.1} parent=1 // pred_region
      %83 = dma.done [#allocation7], 512
    $region53: #{predict.1} parent=1 // pred_fallthru
      _
    // Predicated region
    $region54: #{predict.1} parent=1 // pred_check
      _
    $region55: #{predict.1} parent=1 // pred_check_branch
      %85 = sbr.rel (0) target = $region57
    $region56: #{predict.1} parent=1 // pred_region
      %86 = dma.done [#allocation7], 16
    $region57: #{predict.1} parent=1 // pred_fallthru
      _
    // Predicated region
    $region58: #{predict.1} parent=1 // pred_check
      _
    $region59: #{predict.1} parent=1 // pred_check_branch
      %88 = sbr.rel (0) target = $region61
    $region60: #{predict.1} parent=1 // pred_region
      %89 = dma.done [#allocation10], 16
    $region61: #{predict.1} parent=1 // pred_fallthru
      _
    %v90 = vld [vmem:[%s0] sm:$0xff]
    %v91 = vld [vmem:[%s0 + $0x8] sm:$0xff]
    %v92 = vld [vmem:[#allocation3] sm:$0xff]
    %v93 = vld [vmem:[#allocation3 + $0x8] sm:$0xff]
    %v94 = vld [vmem:[%s3] sm:$0x1]
    %v96 = vlaneseq
    %v97 = vshrl.u32 %v96, 7
    %v98 = vsub.s32 0, %v97
    %v99 = vrot.slane %v94, %v98
    %vm101 = vcmask 130048
    %v103 = vsel %vm101, %v90, 0
    %v106 = vsel %vm101, %v91, 0
    %108 = vmatprep.subr.mxu0 0.0
    %109 = vmatpush1.msra.mxu0 %v92
    %110 = vmatprep.subr.mxu0 0.0
    %111 = vmatpush1.msra.mxu0 %v93
    %112 = vmatprep.subr.mxu0 0.0
    %113 = vmatpush1.msra.mxu0 0.0
    %114 = vmatprep.subr.mxu0 0.0
    %115 = vmatpush1.msra.mxu0 0.0
    %116 = vmatprep.subr.mxu0 0.0
    %117 = vmatpush1.msra.mxu0 0.0
    %118 = vmatprep.subr.mxu0 0.0
    %119 = vmatpush1.msra.mxu0 0.0
    %120 = vmatprep.subr.mxu0 0.0
    %121 = vmatpush1.msra.mxu0 0.0
    %122 = vmatprep.subr.mxu0 0.0
    %123 = vmatpush1.msra.mxu0 0.0
    %124 = vmatprep.subr.mxu0 0.0
    %125 = vmatpush1.msra.mxu0 0.0
    %126 = vmatprep.subr.mxu0 0.0
    %127 = vmatpush1.msra.mxu0 0.0
    %128 = vmatprep.subr.mxu0 0.0
    %129 = vmatpush1.msra.mxu0 0.0
    %130 = vmatprep.subr.mxu0 0.0
    %131 = vmatpush1.msra.mxu0 0.0
    %132 = vmatprep.subr.mxu0 0.0
    %133 = vmatpush1.msra.mxu0 0.0
    %134 = vmatprep.subr.mxu0 0.0
    %135 = vmatpush1.msra.mxu0 0.0
    %136 = vmatprep.subr.mxu0 0.0
    %137 = vmatpush1.msra.mxu0 0.0
    %138 = vmatprep.subr.mxu0 0.0
    %139 = vmatpush1.msra.mxu0 0.0
    %140 = vmatprep.subr.mxu0 0.0
    %141 = vmatpush1.msra.mxu0 0.0
    %142 = vmatprep.subr.mxu0 0.0
    %143 = vmatpush1.msra.mxu0 0.0
    %144 = vmatprep.subr.mxu0 0.0
    %145 = vmatpush1.msra.mxu0 0.0
    %146 = vmatprep.subr.mxu0 0.0
    %147 = vmatpush1.msra.mxu0 0.0
    %148 = vmatprep.subr.mxu0 0.0
    %149 = vmatpush1.msra.mxu0 0.0
    %150 = vmatprep.subr.mxu0 0.0
    %151 = vmatpush1.msra.mxu0 0.0
    %152 = vmatprep.subr.mxu0 0.0
    %153 = vmatpush1.msra.mxu0 0.0
    %154 = vmatprep.subr.mxu0 0.0
    %155 = vmatpush1.msra.mxu0 0.0
    %156 = vmatprep.subr.mxu0 0.0
    %157 = vmatpush1.msra.mxu0 0.0
    %158 = vmatprep.subr.mxu0 0.0
    %159 = vmatpush1.msra.mxu0 0.0
    %160 = vmatprep.subr.mxu0 0.0
    %161 = vmatpush1.msra.mxu0 0.0
    %162 = vmatprep.subr.mxu0 0.0
    %163 = vmatpush1.msra.mxu0 0.0
    %164 = vmatprep.subr.mxu0 0.0
    %165 = vmatpush1.msra.mxu0 0.0
    %166 = vmatprep.subr.mxu0 0.0
    %167 = vmatpush1.msra.mxu0 0.0
    %168 = vmatprep.subr.mxu0 0.0
    %169 = vmatpush1.msra.mxu0 0.0
    %170 = vmatprep.subr.mxu0 0.0
    %171 = vmatpush1.msra.mxu0 0.0
    %172 = vmatprep.mubr.f32.mxu0 0.0
    %173 = vmatmul.mubr.f32.gmra.mrb[0].mxu0 %v103
    %v174 = vpop.f32.mrb[0].mxu0
    %v175 = vadd.f32 %v99, %v174
    %v176 = vpop.f32.mrb[0].mxu0
    %177 = vmatprep.mubr.f32.mxu0 0.0
    %178 = vmatmul.mubr.f32.gmra.mrb[0].mxu0 %v106
    %v179 = vpop.f32.mrb[0].mxu0
    %v180 = vadd.f32 %v99, %v179
    %v181 = vpop.f32.mrb[0].mxu0
    %182 = vdwg.mxu0
    %v183 = vld [vmem:[%s2] sm:$0xff]
    %v184 = vld [vmem:[%s2 + $0x8] sm:$0xff]
    %v185 = vld [vmem:[%s2 + $0x10] sm:$0xff]
    %v186 = vld [vmem:[%s2 + $0x18] sm:$0xff]
    %vm187 = vcmask 261120
    %v189 = vsel %vm187, 0.0, 0
    %191 = vmatprep.subr.mxu0 0.0
    %192 = vmatpush1.msra.mxu0 %v183
    %193 = vmatprep.subr.mxu0 0.0
    %194 = vmatpush1.msra.mxu0 %v184
    %195 = vmatprep.subr.mxu0 0.0
    %196 = vmatpush1.msra.mxu0 %v185
    %197 = vmatprep.subr.mxu0 0.0
    %198 = vmatpush1.msra.mxu0 %v186
    %199 = vmatprep.subr.mxu0 0.0
    %200 = vmatpush1.msra.mxu0 0.0
    %201 = vmatprep.subr.mxu0 0.0
    %202 = vmatpush1.msra.mxu0 0.0
    %203 = vmatprep.subr.mxu0 0.0
    %204 = vmatpush1.msra.mxu0 0.0
    %205 = vmatprep.subr.mxu0 0.0
    %206 = vmatpush1.msra.mxu0 0.0
    %207 = vmatprep.subr.mxu0 0.0
    %208 = vmatpush1.msra.mxu0 0.0
    %209 = vmatprep.subr.mxu0 0.0
    %210 = vmatpush1.msra.mxu0 0.0
    %211 = vmatprep.subr.mxu0 0.0
    %212 = vmatpush1.msra.mxu0 0.0
    %213 = vmatprep.subr.mxu0 0.0
    %214 = vmatpush1.msra.mxu0 0.0
    %215 = vmatprep.subr.mxu0 0.0
    %216 = vmatpush1.msra.mxu0 0.0
    %217 = vmatprep.subr.mxu0 0.0
    %218 = vmatpush1.msra.mxu0 0.0
    %219 = vmatprep.subr.mxu0 0.0
    %220 = vmatpush1.msra.mxu0 0.0
    %221 = vmatprep.subr.mxu0 0.0
    %222 = vmatpush1.msra.mxu0 0.0
    %223 = vmatprep.subr.mxu0 0.0
    %224 = vmatpush1.msra.mxu0 0.0
    %225 = vmatprep.subr.mxu0 0.0
    %226 = vmatpush1.msra.mxu0 0.0
    %227 = vmatprep.subr.mxu0 0.0
    %228 = vmatpush1.msra.mxu0 0.0
    %229 = vmatprep.subr.mxu0 0.0
    %230 = vmatpush1.msra.mxu0 0.0
    %231 = vmatprep.subr.mxu0 0.0
    %232 = vmatpush1.msra.mxu0 0.0
    %233 = vmatprep.subr.mxu0 0.0
    %234 = vmatpush1.msra.mxu0 0.0
    %235 = vmatprep.subr.mxu0 0.0
    %236 = vmatpush1.msra.mxu0 0.0
    %237 = vmatprep.subr.mxu0 0.0
    %238 = vmatpush1.msra.mxu0 0.0
    %239 = vmatprep.subr.mxu0 0.0
    %240 = vmatpush1.msra.mxu0 0.0
    %241 = vmatprep.subr.mxu0 0.0
    %242 = vmatpush1.msra.mxu0 0.0
    %243 = vmatprep.subr.mxu0 0.0
    %244 = vmatpush1.msra.mxu0 0.0
    %245 = vmatprep.subr.mxu0 0.0
    %246 = vmatpush1.msra.mxu0 0.0
    %247 = vmatprep.subr.mxu0 0.0
    %248 = vmatpush1.msra.mxu0 0.0
    %249 = vmatprep.subr.mxu0 0.0
    %250 = vmatpush1.msra.mxu0 0.0
    %251 = vmatprep.subr.mxu0 0.0
    %252 = vmatpush1.msra.mxu0 0.0
    %253 = vmatprep.subr.mxu0 0.0
    %254 = vmatpush1.msra.mxu0 0.0
    %255 = vmatprep.mubr.f32.mxu0 0.0
    %256 = vmatmul.mubr.f32.gmra.mrb[0].mxu0 %v189
    %v257 = vpop.f32.mrb[0].mxu0
    %v258 = vadd.f32 0.0, %v257
    %v259 = vpop.f32.mrb[0].mxu0
    %260 = vdwg.mxu0
    %v261 = vadd.f32 %v175, %v258
    %v262 = vxor.u32 %v261, 2147483648
    %v263 = vmul.f32 %v262, 1.442695
    %v264 = vpow.pop %v263
    %v265 = vadd.f32 %v264, 1.0
    %v266 = vrcp.pop %v265
    %v267 = vmul.f32 1.0, %v266
    %v268 = vtanh.pop %v261
    %269 = vrot.lane.b32.xlu0 %v267, 96
    %v270 = vpop.permute.xlu0 %269
    %271 = vrot.lane.b32.xlu0 %v268, 64
    %v272 = vpop.permute.xlu0 %271
    %273 = vrot.lane.b32.xlu0 %v267, 32
    %v274 = vpop.permute.xlu0 %273
    %v275 = vmul.f32 %v270, 0.0
    %v276 = vmul.f32 %v267, %v272
    %v277 = vadd.f32 %v275, %v276
    %v278 = vtanh.pop %v277
    %v279 = vmul.f32 %v274, %v278
    %v280 = vmax.f32 %v279, 0.0
    %vm281 = vcmask 254976
    %282 = vst.msk [vmem:[#allocation2] sm:$0x3] %vm281, %v280
    %v284 = vsel %vm187, %v279, 0
    %286 = vmatprep.subr.mxu0 0.0
    %287 = vmatpush1.msra.mxu0 %v183
    %288 = vmatprep.subr.mxu0 0.0
    %289 = vmatpush1.msra.mxu0 %v184
    %290 = vmatprep.subr.mxu0 0.0
    %291 = vmatpush1.msra.mxu0 %v185
    %292 = vmatprep.subr.mxu0 0.0
    %293 = vmatpush1.msra.mxu0 %v186
    %294 = vmatprep.subr.mxu0 0.0
    %295 = vmatpush1.msra.mxu0 0.0
    %296 = vmatprep.subr.mxu0 0.0
    %297 = vmatpush1.msra.mxu0 0.0
    %298 = vmatprep.subr.mxu0 0.0
    %299 = vmatpush1.msra.mxu0 0.0
    %300 = vmatprep.subr.mxu0 0.0
    %301 = vmatpush1.msra.mxu0 0.0
    %302 = vmatprep.subr.mxu0 0.0
    %303 = vmatpush1.msra.mxu0 0.0
    %304 = vmatprep.subr.mxu0 0.0
    %305 = vmatpush1.msra.mxu0 0.0
    %306 = vmatprep.subr.mxu0 0.0
    %307 = vmatpush1.msra.mxu0 0.0
    %308 = vmatprep.subr.mxu0 0.0
    %309 = vmatpush1.msra.mxu0 0.0
    %310 = vmatprep.subr.mxu0 0.0
    %311 = vmatpush1.msra.mxu0 0.0
    %312 = vmatprep.subr.mxu0 0.0
    %313 = vmatpush1.msra.mxu0 0.0
    %314 = vmatprep.subr.mxu0 0.0
    %315 = vmatpush1.msra.mxu0 0.0
    %316 = vmatprep.subr.mxu0 0.0
    %317 = vmatpush1.msra.mxu0 0.0
    %318 = vmatprep.subr.mxu0 0.0
    %319 = vmatpush1.msra.mxu0 0.0
    %320 = vmatprep.subr.mxu0 0.0
    %321 = vmatpush1.msra.mxu0 0.0
    %322 = vmatprep.subr.mxu0 0.0
    %323 = vmatpush1.msra.mxu0 0.0
    %324 = vmatprep.subr.mxu0 0.0
    %325 = vmatpush1.msra.mxu0 0.0
    %326 = vmatprep.subr.mxu0 0.0
    %327 = vmatpush1.msra.mxu0 0.0
    %328 = vmatprep.subr.mxu0 0.0
    %329 = vmatpush1.msra.mxu0 0.0
    %330 = vmatprep.subr.mxu0 0.0
    %331 = vmatpush1.msra.mxu0 0.0
    %332 = vmatprep.subr.mxu0 0.0
    %333 = vmatpush1.msra.mxu0 0.0
    %334 = vmatprep.subr.mxu0 0.0
    %335 = vmatpush1.msra.mxu0 0.0
    %336 = vmatprep.subr.mxu0 0.0
    %337 = vmatpush1.msra.mxu0 0.0
    %338 = vmatprep.subr.mxu0 0.0
    %339 = vmatpush1.msra.mxu0 0.0
    %340 = vmatprep.subr.mxu0 0.0
    %341 = vmatpush1.msra.mxu0 0.0
    %342 = vmatprep.subr.mxu0 0.0
    %343 = vmatpush1.msra.mxu0 0.0
    %344 = vmatprep.subr.mxu0 0.0
    %345 = vmatpush1.msra.mxu0 0.0
    %346 = vmatprep.subr.mxu0 0.0
    %347 = vmatpush1.msra.mxu0 0.0
    %348 = vmatprep.subr.mxu0 0.0
    %349 = vmatpush1.msra.mxu0 0.0
    %350 = vmatprep.mubr.f32.mxu0 0.0
    %351 = vmatmul.mubr.f32.gmra.mrb[0].mxu0 %v284
    %v352 = vpop.f32.mrb[0].mxu0
    %v353 = vadd.f32 0.0, %v352
    %v354 = vpop.f32.mrb[0].mxu0
    %355 = vdwg.mxu0
    %v357 = vrot.slane %v353, 6
    %v359 = vadd.f32 %v175, %v357
    %v360 = vxor.u32 %v359, 2147483648
    %v361 = vmul.f32 %v360, 1.442695
    %v362 = vpow.pop %v361
    %v363 = vadd.f32 %v362, 1.0
    %v364 = vrcp.pop %v363
    %v365 = vmul.f32 1.0, %v364
    %v366 = vtanh.pop %v359
    %v368 = vrot.slane %v365, 2
    %370 = vrot.lane.b32.xlu0 %v368, 96
    %v371 = vpop.permute.xlu0 %370
    %v373 = vrot.slane %v366, 2
    %375 = vrot.lane.b32.xlu0 %v373, 64
    %v376 = vpop.permute.xlu0 %375
    %377 = vrot.lane.b32.xlu0 %v368, 32
    %v378 = vpop.permute.xlu0 %377
    %v379 = vmul.f32 %v371, %v277
    %v381 = vrot.slane %v376, 6
    %v383 = vmul.f32 %v365, %v381
    %v385 = vrot.slane %v383, 2
    %v387 = vadd.f32 %v379, %v385
    %v388 = vtanh.pop %v387
    %v389 = vmul.f32 %v378, %v388
    %v390 = vmax.f32 %v389, 0.0
    %391 = vst.msk [vmem:[#allocation2 + $0x2] sm:$0x3] %vm281, %v390
    %v393 = vsel %vm187, %v389, 0
    %395 = vmatprep.subr.mxu0 0.0
    %396 = vmatpush1.msra.mxu0 %v183
    %397 = vmatprep.subr.mxu0 0.0
    %398 = vmatpush1.msra.mxu0 %v184
    %399 = vmatprep.subr.mxu0 0.0
    %400 = vmatpush1.msra.mxu0 %v185
    %401 = vmatprep.subr.mxu0 0.0
    %402 = vmatpush1.msra.mxu0 %v186
    %403 = vmatprep.subr.mxu0 0.0
    %404 = vmatpush1.msra.mxu0 0.0
    %405 = vmatprep.subr.mxu0 0.0
    %406 = vmatpush1.msra.mxu0 0.0
    %407 = vmatprep.subr.mxu0 0.0
    %408 = vmatpush1.msra.mxu0 0.0
    %409 = vmatprep.subr.mxu0 0.0
    %410 = vmatpush1.msra.mxu0 0.0
    %411 = vmatprep.subr.mxu0 0.0
    %412 = vmatpush1.msra.mxu0 0.0
    %413 = vmatprep.subr.mxu0 0.0
    %414 = vmatpush1.msra.mxu0 0.0
    %415 = vmatprep.subr.mxu0 0.0
    %416 = vmatpush1.msra.mxu0 0.0
    %417 = vmatprep.subr.mxu0 0.0
    %418 = vmatpush1.msra.mxu0 0.0
    %419 = vmatprep.subr.mxu0 0.0
    %420 = vmatpush1.msra.mxu0 0.0
    %421 = vmatprep.subr.mxu0 0.0
    %422 = vmatpush1.msra.mxu0 0.0
    %423 = vmatprep.subr.mxu0 0.0
    %424 = vmatpush1.msra.mxu0 0.0
    %425 = vmatprep.subr.mxu0 0.0
    %426 = vmatpush1.msra.mxu0 0.0
    %427 = vmatprep.subr.mxu0 0.0
    %428 = vmatpush1.msra.mxu0 0.0
    %429 = vmatprep.subr.mxu0 0.0
    %430 = vmatpush1.msra.mxu0 0.0
    %431 = vmatprep.subr.mxu0 0.0
    %432 = vmatpush1.msra.mxu0 0.0
    %433 = vmatprep.subr.mxu0 0.0
    %434 = vmatpush1.msra.mxu0 0.0
    %435 = vmatprep.subr.mxu0 0.0
    %436 = vmatpush1.msra.mxu0 0.0
    %437 = vmatprep.subr.mxu0 0.0
    %438 = vmatpush1.msra.mxu0 0.0
    %439 = vmatprep.subr.mxu0 0.0
    %440 = vmatpush1.msra.mxu0 0.0
    %441 = vmatprep.subr.mxu0 0.0
    %442 = vmatpush1.msra.mxu0 0.0
    %443 = vmatprep.subr.mxu0 0.0
    %444 = vmatpush1.msra.mxu0 0.0
    %445 = vmatprep.subr.mxu0 0.0
    %446 = vmatpush1.msra.mxu0 0.0
    %447 = vmatprep.subr.mxu0 0.0
    %448 = vmatpush1.msra.mxu0 0.0
    %449 = vmatprep.subr.mxu0 0.0
    %450 = vmatpush1.msra.mxu0 0.0
    %451 = vmatprep.subr.mxu0 0.0
    %452 = vmatpush1.msra.mxu0 0.0
    %453 = vmatprep.subr.mxu0 0.0
    %454 = vmatpush1.msra.mxu0 0.0
    %455 = vmatprep.subr.mxu0 0.0
    %456 = vmatpush1.msra.mxu0 0.0
    %457 = vmatprep.subr.mxu0 0.0
    %458 = vmatpush1.msra.mxu0 0.0
    %459 = vmatprep.mubr.f32.mxu0 0.0
    %460 = vmatmul.mubr.f32.gmra.mrb[0].mxu0 %v393
    %v461 = vpop.f32.mrb[0].mxu0
    %v462 = vadd.f32 0.0, %v461
    %v463 = vpop.f32.mrb[0].mxu0
    %464 = vdwg.mxu0
    %v466 = vrot.slane %v462, 4
    %v468 = vadd.f32 %v175, %v466
    %v469 = vxor.u32 %v468, 2147483648
    %v470 = vmul.f32 %v469, 1.442695
    %v471 = vpow.pop %v470
    %v472 = vadd.f32 %v471, 1.0
    %v473 = vrcp.pop %v472
    %v474 = vmul.f32 1.0, %v473
    %v475 = vtanh.pop %v468
    %v477 = vrot.slane %v474, 4
    %479 = vrot.lane.b32.xlu0 %v477, 96
    %v480 = vpop.permute.xlu0 %479
    %v482 = vrot.slane %v475, 4
    %484 = vrot.lane.b32.xlu0 %v482, 64
    %v485 = vpop.permute.xlu0 %484
    %486 = vrot.lane.b32.xlu0 %v477, 32
    %v487 = vpop.permute.xlu0 %486
    %v488 = vmul.f32 %v480, %v387
    %v490 = vrot.slane %v485, 4
    %v492 = vmul.f32 %v474, %v490
    %v494 = vrot.slane %v492, 4
    %v496 = vadd.f32 %v488, %v494
    %v497 = vtanh.pop %v496
    %v498 = vmul.f32 %v487, %v497
    %v499 = vmax.f32 %v498, 0.0
    %500 = vst.msk [vmem:[#allocation2 + $0x4] sm:$0x3] %vm281, %v499
    %v502 = vsel %vm187, %v498, 0
    %504 = vmatprep.subr.mxu0 0.0
    %505 = vmatpush1.msra.mxu0 %v183
    %506 = vmatprep.subr.mxu0 0.0
    %507 = vmatpush1.msra.mxu0 %v184
    %508 = vmatprep.subr.mxu0 0.0
    %509 = vmatpush1.msra.mxu0 %v185
    %510 = vmatprep.subr.mxu0 0.0
    %511 = vmatpush1.msra.mxu0 %v186
    %512 = vmatprep.subr.mxu0 0.0
    %513 = vmatpush1.msra.mxu0 0.0
    %514 = vmatprep.subr.mxu0 0.0
    %515 = vmatpush1.msra.mxu0 0.0
    %516 = vmatprep.subr.mxu0 0.0
    %517 = vmatpush1.msra.mxu0 0.0
    %518 = vmatprep.subr.mxu0 0.0
    %519 = vmatpush1.msra.mxu0 0.0
    %520 = vmatprep.subr.mxu0 0.0
    %521 = vmatpush1.msra.mxu0 0.0
    %522 = vmatprep.subr.mxu0 0.0
    %523 = vmatpush1.msra.mxu0 0.0
    %524 = vmatprep.subr.mxu0 0.0
    %525 = vmatpush1.msra.mxu0 0.0
    %526 = vmatprep.subr.mxu0 0.0
    %527 = vmatpush1.msra.mxu0 0.0
    %528 = vmatprep.subr.mxu0 0.0
    %529 = vmatpush1.msra.mxu0 0.0
    %530 = vmatprep.subr.mxu0 0.0
    %531 = vmatpush1.msra.mxu0 0.0
    %532 = vmatprep.subr.mxu0 0.0
    %533 = vmatpush1.msra.mxu0 0.0
    %534 = vmatprep.subr.mxu0 0.0
    %535 = vmatpush1.msra.mxu0 0.0
    %536 = vmatprep.subr.mxu0 0.0
    %537 = vmatpush1.msra.mxu0 0.0
    %538 = vmatprep.subr.mxu0 0.0
    %539 = vmatpush1.msra.mxu0 0.0
    %540 = vmatprep.subr.mxu0 0.0
    %541 = vmatpush1.msra.mxu0 0.0
    %542 = vmatprep.subr.mxu0 0.0
    %543 = vmatpush1.msra.mxu0 0.0
    %544 = vmatprep.subr.mxu0 0.0
    %545 = vmatpush1.msra.mxu0 0.0
    %546 = vmatprep.subr.mxu0 0.0
    %547 = vmatpush1.msra.mxu0 0.0
    %548 = vmatprep.subr.mxu0 0.0
    %549 = vmatpush1.msra.mxu0 0.0
    %550 = vmatprep.subr.mxu0 0.0
    %551 = vmatpush1.msra.mxu0 0.0
    %552 = vmatprep.subr.mxu0 0.0
    %553 = vmatpush1.msra.mxu0 0.0
    %554 = vmatprep.subr.mxu0 0.0
    %555 = vmatpush1.msra.mxu0 0.0
    %556 = vmatprep.subr.mxu0 0.0
    %557 = vmatpush1.msra.mxu0 0.0
    %558 = vmatprep.subr.mxu0 0.0
    %559 = vmatpush1.msra.mxu0 0.0
    %560 = vmatprep.subr.mxu0 0.0
    %561 = vmatpush1.msra.mxu0 0.0
    %562 = vmatprep.subr.mxu0 0.0
    %563 = vmatpush1.msra.mxu0 0.0
    %564 = vmatprep.subr.mxu0 0.0
    %565 = vmatpush1.msra.mxu0 0.0
    %566 = vmatprep.subr.mxu0 0.0
    %567 = vmatpush1.msra.mxu0 0.0
    %568 = vmatprep.mubr.f32.mxu0 0.0
    %569 = vmatmul.mubr.f32.gmra.mrb[0].mxu0 %v502
    %v570 = vpop.f32.mrb[0].mxu0
    %v571 = vadd.f32 0.0, %v570
    %v572 = vpop.f32.mrb[0].mxu0
    %573 = vdwg.mxu0
    %v575 = vrot.slane %v571, 2
    %v577 = vadd.f32 %v175, %v575
    %v578 = vxor.u32 %v577, 2147483648
    %v579 = vmul.f32 %v578, 1.442695
    %v580 = vpow.pop %v579
    %v581 = vadd.f32 %v580, 1.0
    %v582 = vrcp.pop %v581
    %v583 = vmul.f32 1.0, %v582
    %v584 = vtanh.pop %v577
    %v586 = vrot.slane %v583, 6
    %588 = vrot.lane.b32.xlu0 %v586, 96
    %v589 = vpop.permute.xlu0 %588
    %v591 = vrot.slane %v584, 6
    %593 = vrot.lane.b32.xlu0 %v591, 64
    %v594 = vpop.permute.xlu0 %593
    %595 = vrot.lane.b32.xlu0 %v586, 32
    %v596 = vpop.permute.xlu0 %595
    %v597 = vmul.f32 %v589, %v496
    %v599 = vrot.slane %v594, 2
    %v601 = vmul.f32 %v583, %v599
    %v603 = vrot.slane %v601, 6
    %v605 = vadd.f32 %v597, %v603
    %v606 = vtanh.pop %v605
    %v607 = vmul.f32 %v596, %v606
    %v608 = vmax.f32 %v607, 0.0
    %609 = vst.msk [vmem:[#allocation2 + $0x6] sm:$0x3] %vm281, %v608
    %v611 = vsel %vm187, %v607, 0
    %613 = vmatprep.subr.mxu0 0.0
    %614 = vmatpush1.msra.mxu0 %v183
    %615 = vmatprep.subr.mxu0 0.0
    %616 = vmatpush1.msra.mxu0 %v184
    %617 = vmatprep.subr.mxu0 0.0
    %618 = vmatpush1.msra.mxu0 %v185
    %619 = vmatprep.subr.mxu0 0.0
    %620 = vmatpush1.msra.mxu0 %v186
    %621 = vmatprep.subr.mxu0 0.0
    %622 = vmatpush1.msra.mxu0 0.0
    %623 = vmatprep.subr.mxu0 0.0
    %624 = vmatpush1.msra.mxu0 0.0
    %625 = vmatprep.subr.mxu0 0.0
    %626 = vmatpush1.msra.mxu0 0.0
    %627 = vmatprep.subr.mxu0 0.0
    %628 = vmatpush1.msra.mxu0 0.0
    %629 = vmatprep.subr.mxu0 0.0
    %630 = vmatpush1.msra.mxu0 0.0
    %631 = vmatprep.subr.mxu0 0.0
    %632 = vmatpush1.msra.mxu0 0.0
    %633 = vmatprep.subr.mxu0 0.0
    %634 = vmatpush1.msra.mxu0 0.0
    %635 = vmatprep.subr.mxu0 0.0
    %636 = vmatpush1.msra.mxu0 0.0
    %637 = vmatprep.subr.mxu0 0.0
    %638 = vmatpush1.msra.mxu0 0.0
    %639 = vmatprep.subr.mxu0 0.0
    %640 = vmatpush1.msra.mxu0 0.0
    %641 = vmatprep.subr.mxu0 0.0
    %642 = vmatpush1.msra.mxu0 0.0
    %643 = vmatprep.subr.mxu0 0.0
    %644 = vmatpush1.msra.mxu0 0.0
    %645 = vmatprep.subr.mxu0 0.0
    %646 = vmatpush1.msra.mxu0 0.0
    %647 = vmatprep.subr.mxu0 0.0
    %648 = vmatpush1.msra.mxu0 0.0
    %649 = vmatprep.subr.mxu0 0.0
    %650 = vmatpush1.msra.mxu0 0.0
    %651 = vmatprep.subr.mxu0 0.0
    %652 = vmatpush1.msra.mxu0 0.0
    %653 = vmatprep.subr.mxu0 0.0
    %654 = vmatpush1.msra.mxu0 0.0
    %655 = vmatprep.subr.mxu0 0.0
    %656 = vmatpush1.msra.mxu0 0.0
    %657 = vmatprep.subr.mxu0 0.0
    %658 = vmatpush1.msra.mxu0 0.0
    %659 = vmatprep.subr.mxu0 0.0
    %660 = vmatpush1.msra.mxu0 0.0
    %661 = vmatprep.subr.mxu0 0.0
    %662 = vmatpush1.msra.mxu0 0.0
    %663 = vmatprep.subr.mxu0 0.0
    %664 = vmatpush1.msra.mxu0 0.0
    %665 = vmatprep.subr.mxu0 0.0
    %666 = vmatpush1.msra.mxu0 0.0
    %667 = vmatprep.subr.mxu0 0.0
    %668 = vmatpush1.msra.mxu0 0.0
    %669 = vmatprep.subr.mxu0 0.0
    %670 = vmatpush1.msra.mxu0 0.0
    %671 = vmatprep.subr.mxu0 0.0
    %672 = vmatpush1.msra.mxu0 0.0
    %673 = vmatprep.subr.mxu0 0.0
    %674 = vmatpush1.msra.mxu0 0.0
    %675 = vmatprep.subr.mxu0 0.0
    %676 = vmatpush1.msra.mxu0 0.0
    %677 = vmatprep.mubr.f32.mxu0 0.0
    %678 = vmatmul.mubr.f32.gmra.mrb[0].mxu0 %v611
    %v679 = vpop.f32.mrb[0].mxu0
    %v680 = vadd.f32 0.0, %v679
    %v681 = vpop.f32.mrb[0].mxu0
    %682 = vdwg.mxu0
    %v683 = vadd.f32 %v180, %v680
    %v684 = vxor.u32 %v683, 2147483648
    %v685 = vmul.f32 %v684, 1.442695
    %v686 = vpow.pop %v685
    %v687 = vadd.f32 %v686, 1.0
    %v688 = vrcp.pop %v687
    %v689 = vmul.f32 1.0, %v688
    %v690 = vtanh.pop %v683
    %691 = vrot.lane.b32.xlu0 %v689, 96
    %v692 = vpop.permute.xlu0 %691
    %693 = vrot.lane.b32.xlu0 %v690, 64
    %v694 = vpop.permute.xlu0 %693
    %695 = vrot.lane.b32.xlu0 %v689, 32
    %v696 = vpop.permute.xlu0 %695
    %v697 = vmul.f32 %v692, %v605
    %v698 = vmul.f32 %v689, %v694
    %v699 = vadd.f32 %v697, %v698
    %v700 = vtanh.pop %v699
    %v701 = vmul.f32 %v696, %v700
    %v702 = vmax.f32 %v701, 0.0
    %703 = vst.msk [vmem:[#allocation2 + $0x8] sm:$0x3] %vm281, %v702
    %v705 = vsel %vm187, %v701, 0
    %707 = vmatprep.subr.mxu0 0.0
    %708 = vmatpush1.msra.mxu0 %v183
    %709 = vmatprep.subr.mxu0 0.0
    %710 = vmatpush1.msra.mxu0 %v184
    %711 = vmatprep.subr.mxu0 0.0
    %712 = vmatpush1.msra.mxu0 %v185
    %713 = vmatprep.subr.mxu0 0.0
    %714 = vmatpush1.msra.mxu0 %v186
    %715 = vmatprep.subr.mxu0 0.0
    %716 = vmatpush1.msra.mxu0 0.0
    %717 = vmatprep.subr.mxu0 0.0
    %718 = vmatpush1.msra.mxu0 0.0
    %719 = vmatprep.subr.mxu0 0.0
    %720 = vmatpush1.msra.mxu0 0.0
    %721 = vmatprep.subr.mxu0 0.0
    %722 = vmatpush1.msra.mxu0 0.0
    %723 = vmatprep.subr.mxu0 0.0
    %724 = vmatpush1.msra.mxu0 0.0
    %725 = vmatprep.subr.mxu0 0.0
    %726 = vmatpush1.msra.mxu0 0.0
    %727 = vmatprep.subr.mxu0 0.0
    %728 = vmatpush1.msra.mxu0 0.0
    %729 = vmatprep.subr.mxu0 0.0
    %730 = vmatpush1.msra.mxu0 0.0
    %731 = vmatprep.subr.mxu0 0.0
    %732 = vmatpush1.msra.mxu0 0.0
    %733 = vmatprep.subr.mxu0 0.0
    %734 = vmatpush1.msra.mxu0 0.0
    %735 = vmatprep.subr.mxu0 0.0
    %736 = vmatpush1.msra.mxu0 0.0
    %737 = vmatprep.subr.mxu0 0.0
    %738 = vmatpush1.msra.mxu0 0.0
    %739 = vmatprep.subr.mxu0 0.0
    %740 = vmatpush1.msra.mxu0 0.0
    %741 = vmatprep.subr.mxu0 0.0
    %742 = vmatpush1.msra.mxu0 0.0
    %743 = vmatprep.subr.mxu0 0.0
    %744 = vmatpush1.msra.mxu0 0.0
    %745 = vmatprep.subr.mxu0 0.0
    %746 = vmatpush1.msra.mxu0 0.0
    %747 = vmatprep.subr.mxu0 0.0
    %748 = vmatpush1.msra.mxu0 0.0
    %749 = vmatprep.subr.mxu0 0.0
    %750 = vmatpush1.msra.mxu0 0.0
    %751 = vmatprep.subr.mxu0 0.0
    %752 = vmatpush1.msra.mxu0 0.0
    %753 = vmatprep.subr.mxu0 0.0
    %754 = vmatpush1.msra.mxu0 0.0
    %755 = vmatprep.subr.mxu0 0.0
    %756 = vmatpush1.msra.mxu0 0.0
    %757 = vmatprep.subr.mxu0 0.0
    %758 = vmatpush1.msra.mxu0 0.0
    %759 = vmatprep.subr.mxu0 0.0
    %760 = vmatpush1.msra.mxu0 0.0
    %761 = vmatprep.subr.mxu0 0.0
    %762 = vmatpush1.msra.mxu0 0.0
    %763 = vmatprep.subr.mxu0 0.0
    %764 = vmatpush1.msra.mxu0 0.0
    %765 = vmatprep.subr.mxu0 0.0
    %766 = vmatpush1.msra.mxu0 0.0
    %767 = vmatprep.subr.mxu0 0.0
    %768 = vmatpush1.msra.mxu0 0.0
    %769 = vmatprep.subr.mxu0 0.0
    %770 = vmatpush1.msra.mxu0 0.0
    %771 = vmatprep.mubr.f32.mxu0 0.0
    %772 = vmatmul.mubr.f32.gmra.mrb[0].mxu0 %v705
    %v773 = vpop.f32.mrb[0].mxu0
    %v774 = vadd.f32 0.0, %v773
    %v775 = vpop.f32.mrb[0].mxu0
    %776 = vdwg.mxu0
    %v778 = vrot.slane %v774, 6
    %v780 = vadd.f32 %v180, %v778
    %v781 = vxor.u32 %v780, 2147483648
    %v782 = vmul.f32 %v781, 1.442695
    %v783 = vpow.pop %v782
    %v784 = vadd.f32 %v783, 1.0
    %v785 = vrcp.pop %v784
    %v786 = vmul.f32 1.0, %v785
    %v787 = vtanh.pop %v780
    %v789 = vrot.slane %v786, 2
    %791 = vrot.lane.b32.xlu0 %v789, 96
    %v792 = vpop.permute.xlu0 %791
    %v794 = vrot.slane %v787, 2
    %796 = vrot.lane.b32.xlu0 %v794, 64
    %v797 = vpop.permute.xlu0 %796
    %798 = vrot.lane.b32.xlu0 %v789, 32
    %v799 = vpop.permute.xlu0 %798
    %v800 = vmul.f32 %v792, %v699
    %v802 = vrot.slane %v797, 6
    %v804 = vmul.f32 %v786, %v802
    %v806 = vrot.slane %v804, 2
    %v808 = vadd.f32 %v800, %v806
    %v809 = vtanh.pop %v808
    %v810 = vmul.f32 %v799, %v809
    %v811 = vmax.f32 %v810, 0.0
    %812 = vst.msk [vmem:[#allocation2 + $0xa] sm:$0x3] %vm281, %v811
    %v814 = vsel %vm187, %v810, 0
    %816 = vmatprep.subr.mxu0 0.0
    %817 = vmatpush1.msra.mxu0 %v183
    %818 = vmatprep.subr.mxu0 0.0
    %819 = vmatpush1.msra.mxu0 %v184
    %820 = vmatprep.subr.mxu0 0.0
    %821 = vmatpush1.msra.mxu0 %v185
    %822 = vmatprep.subr.mxu0 0.0
    %823 = vmatpush1.msra.mxu0 %v186
    %824 = vmatprep.subr.mxu0 0.0
    %825 = vmatpush1.msra.mxu0 0.0
    %826 = vmatprep.subr.mxu0 0.0
    %827 = vmatpush1.msra.mxu0 0.0
    %828 = vmatprep.subr.mxu0 0.0
    %829 = vmatpush1.msra.mxu0 0.0
    %830 = vmatprep.subr.mxu0 0.0
    %831 = vmatpush1.msra.mxu0 0.0
    %832 = vmatprep.subr.mxu0 0.0
    %833 = vmatpush1.msra.mxu0 0.0
    %834 = vmatprep.subr.mxu0 0.0
    %835 = vmatpush1.msra.mxu0 0.0
    %836 = vmatprep.subr.mxu0 0.0
    %837 = vmatpush1.msra.mxu0 0.0
    %838 = vmatprep.subr.mxu0 0.0
    %839 = vmatpush1.msra.mxu0 0.0
    %840 = vmatprep.subr.mxu0 0.0
    %841 = vmatpush1.msra.mxu0 0.0
    %842 = vmatprep.subr.mxu0 0.0
    %843 = vmatpush1.msra.mxu0 0.0
    %844 = vmatprep.subr.mxu0 0.0
    %845 = vmatpush1.msra.mxu0 0.0
    %846 = vmatprep.subr.mxu0 0.0
    %847 = vmatpush1.msra.mxu0 0.0
    %848 = vmatprep.subr.mxu0 0.0
    %849 = vmatpush1.msra.mxu0 0.0
    %850 = vmatprep.subr.mxu0 0.0
    %851 = vmatpush1.msra.mxu0 0.0
    %852 = vmatprep.subr.mxu0 0.0
    %853 = vmatpush1.msra.mxu0 0.0
    %854 = vmatprep.subr.mxu0 0.0
    %855 = vmatpush1.msra.mxu0 0.0
    %856 = vmatprep.subr.mxu0 0.0
    %857 = vmatpush1.msra.mxu0 0.0
    %858 = vmatprep.subr.mxu0 0.0
    %859 = vmatpush1.msra.mxu0 0.0
    %860 = vmatprep.subr.mxu0 0.0
    %861 = vmatpush1.msra.mxu0 0.0
    %862 = vmatprep.subr.mxu0 0.0
    %863 = vmatpush1.msra.mxu0 0.0
    %864 = vmatprep.subr.mxu0 0.0
    %865 = vmatpush1.msra.mxu0 0.0
    %866 = vmatprep.subr.mxu0 0.0
    %867 = vmatpush1.msra.mxu0 0.0
    %868 = vmatprep.subr.mxu0 0.0
    %869 = vmatpush1.msra.mxu0 0.0
    %870 = vmatprep.subr.mxu0 0.0
    %871 = vmatpush1.msra.mxu0 0.0
    %872 = vmatprep.subr.mxu0 0.0
    %873 = vmatpush1.msra.mxu0 0.0
    %874 = vmatprep.subr.mxu0 0.0
    %875 = vmatpush1.msra.mxu0 0.0
    %876 = vmatprep.subr.mxu0 0.0
    %877 = vmatpush1.msra.mxu0 0.0
    %878 = vmatprep.subr.mxu0 0.0
    %879 = vmatpush1.msra.mxu0 0.0
    %880 = vmatprep.mubr.f32.mxu0 0.0
    %881 = vmatmul.mubr.f32.gmra.mrb[0].mxu0 %v814
    %v882 = vpop.f32.mrb[0].mxu0
    %v883 = vadd.f32 0.0, %v882
    %v884 = vpop.f32.mrb[0].mxu0
    %885 = vdwg.mxu0
    %v887 = vrot.slane %v883, 4
    %v889 = vadd.f32 %v180, %v887
    %v890 = vxor.u32 %v889, 2147483648
    %v891 = vmul.f32 %v890, 1.442695
    %v892 = vpow.pop %v891
    %v893 = vadd.f32 %v892, 1.0
    %v894 = vrcp.pop %v893
    %v895 = vmul.f32 1.0, %v894
    %v896 = vtanh.pop %v889
    %v898 = vrot.slane %v895, 4
    %900 = vrot.lane.b32.xlu0 %v898, 96
    %v901 = vpop.permute.xlu0 %900
    %v903 = vrot.slane %v896, 4
    %905 = vrot.lane.b32.xlu0 %v903, 64
    %v906 = vpop.permute.xlu0 %905
    %907 = vrot.lane.b32.xlu0 %v898, 32
    %v908 = vpop.permute.xlu0 %907
    %v909 = vmul.f32 %v901, %v808
    %v911 = vrot.slane %v906, 4
    %v913 = vmul.f32 %v895, %v911
    %v915 = vrot.slane %v913, 4
    %v917 = vadd.f32 %v909, %v915
    %v918 = vtanh.pop %v917
    %v919 = vmul.f32 %v908, %v918
    %v920 = vmax.f32 %v919, 0.0
    %921 = vst.msk [vmem:[#allocation2 + $0xc] sm:$0x3] %vm281, %v920
    %v923 = vsel %vm187, %v919, 0
    %925 = vmatprep.subr.mxu0 0.0
    %926 = vmatpush1.msra.mxu0 %v183
    %927 = vmatprep.subr.mxu0 0.0
    %928 = vmatpush1.msra.mxu0 %v184
    %929 = vmatprep.subr.mxu0 0.0
    %930 = vmatpush1.msra.mxu0 %v185
    %931 = vmatprep.subr.mxu0 0.0
    %932 = vmatpush1.msra.mxu0 %v186
    %933 = vmatprep.subr.mxu0 0.0
    %934 = vmatpush1.msra.mxu0 0.0
    %935 = vmatprep.subr.mxu0 0.0
    %936 = vmatpush1.msra.mxu0 0.0
    %937 = vmatprep.subr.mxu0 0.0
    %938 = vmatpush1.msra.mxu0 0.0
    %939 = vmatprep.subr.mxu0 0.0
    %940 = vmatpush1.msra.mxu0 0.0
    %941 = vmatprep.subr.mxu0 0.0
    %942 = vmatpush1.msra.mxu0 0.0
    %943 = vmatprep.subr.mxu0 0.0
    %944 = vmatpush1.msra.mxu0 0.0
    %945 = vmatprep.subr.mxu0 0.0
    %946 = vmatpush1.msra.mxu0 0.0
    %947 = vmatprep.subr.mxu0 0.0
    %948 = vmatpush1.msra.mxu0 0.0
    %949 = vmatprep.subr.mxu0 0.0
    %950 = vmatpush1.msra.mxu0 0.0
    %951 = vmatprep.subr.mxu0 0.0
    %952 = vmatpush1.msra.mxu0 0.0
    %953 = vmatprep.subr.mxu0 0.0
    %954 = vmatpush1.msra.mxu0 0.0
    %955 = vmatprep.subr.mxu0 0.0
    %956 = vmatpush1.msra.mxu0 0.0
    %957 = vmatprep.subr.mxu0 0.0
    %958 = vmatpush1.msra.mxu0 0.0
    %959 = vmatprep.subr.mxu0 0.0
    %960 = vmatpush1.msra.mxu0 0.0
    %961 = vmatprep.subr.mxu0 0.0
    %962 = vmatpush1.msra.mxu0 0.0
    %963 = vmatprep.subr.mxu0 0.0
    %964 = vmatpush1.msra.mxu0 0.0
    %965 = vmatprep.subr.mxu0 0.0
    %966 = vmatpush1.msra.mxu0 0.0
    %967 = vmatprep.subr.mxu0 0.0
    %968 = vmatpush1.msra.mxu0 0.0
    %969 = vmatprep.subr.mxu0 0.0
    %970 = vmatpush1.msra.mxu0 0.0
    %971 = vmatprep.subr.mxu0 0.0
    %972 = vmatpush1.msra.mxu0 0.0
    %973 = vmatprep.subr.mxu0 0.0
    %974 = vmatpush1.msra.mxu0 0.0
    %975 = vmatprep.subr.mxu0 0.0
    %976 = vmatpush1.msra.mxu0 0.0
    %977 = vmatprep.subr.mxu0 0.0
    %978 = vmatpush1.msra.mxu0 0.0
    %979 = vmatprep.subr.mxu0 0.0
    %980 = vmatpush1.msra.mxu0 0.0
    %981 = vmatprep.subr.mxu0 0.0
    %982 = vmatpush1.msra.mxu0 0.0
    %983 = vmatprep.subr.mxu0 0.0
    %984 = vmatpush1.msra.mxu0 0.0
    %985 = vmatprep.subr.mxu0 0.0
    %986 = vmatpush1.msra.mxu0 0.0
    %987 = vmatprep.subr.mxu0 0.0
    %988 = vmatpush1.msra.mxu0 0.0
    %989 = vmatprep.mubr.f32.mxu0 0.0
    %990 = vmatmul.mubr.f32.gmra.mrb[0].mxu0 %v923
    %v991 = vpop.f32.mrb[0].mxu0
    %v992 = vadd.f32 0.0, %v991
    %v993 = vpop.f32.mrb[0].mxu0
    %994 = vdwg.mxu0
    %v996 = vrot.slane %v992, 2
    %v998 = vadd.f32 %v180, %v996
    %v999 = vxor.u32 %v998, 2147483648
    %v1000 = vmul.f32 %v999, 1.442695
    %v1001 = vpow.pop %v1000
    %v1002 = vadd.f32 %v1001, 1.0
    %v1003 = vrcp.pop %v1002
    %v1004 = vmul.f32 1.0, %v1003
    %v1005 = vtanh.pop %v998
    %v1007 = vrot.slane %v1004, 6
    %1009 = vrot.lane.b32.xlu0 %v1007, 96
    %v1010 = vpop.permute.xlu0 %1009
    %v1012 = vrot.slane %v1005, 6
    %1014 = vrot.lane.b32.xlu0 %v1012, 64
    %v1015 = vpop.permute.xlu0 %1014
    %1016 = vrot.lane.b32.xlu0 %v1007, 32
    %v1017 = vpop.permute.xlu0 %1016
    %v1018 = vmul.f32 %v1010, %v917
    %v1020 = vrot.slane %v1015, 2
    %v1022 = vmul.f32 %v1004, %v1020
    %v1024 = vrot.slane %v1022, 6
    %v1026 = vadd.f32 %v1018, %v1024
    %v1027 = vtanh.pop %v1026
    %v1028 = vmul.f32 %v1017, %v1027
    %v1029 = vmax.f32 %v1028, 0.0
    %1030 = vst.msk [vmem:[#allocation2 + $0xe] sm:$0x3] %vm281, %v1029
    %v1031 = vld [vmem:[#allocation2] sm:$0xff]
    %v1032 = vld [vmem:[#allocation2 + $0x8] sm:$0xff]
    %v1033 = vld [vmem:[%s4] sm:$0xff]
    %v1034 = vld [vmem:[%s4 + $0x8] sm:$0xff]
    %v1035 = vld [vmem:[%s4 + $0x10] sm:$0xff]
    %v1036 = vld [vmem:[%s4 + $0x18] sm:$0xff]
    %v1037 = vld [vmem:[%s6] sm:$0x1]
    %v1039 = vlaneseq
    %v1040 = vshrl.u32 %v1039, 7
    %v1041 = vsub.s32 0, %v1040
    %v1042 = vrot.slane %v1037, %v1041
    %v1045 = vsel %vm187, %v1031, 0
    %v1048 = vsel %vm187, %v1032, 0
    %1050 = vmatprep.subr.mxu0 0.0
    %1051 = vmatpush1.msra.mxu0 %v1033
    %1052 = vmatprep.subr.mxu0 0.0
    %1053 = vmatpush1.msra.mxu0 %v1034
    %1054 = vmatprep.subr.mxu0 0.0
    %1055 = vmatpush1.msra.mxu0 %v1035
    %1056 = vmatprep.subr.mxu0 0.0
    %1057 = vmatpush1.msra.mxu0 %v1036
    %1058 = vmatprep.subr.mxu0 0.0
    %1059 = vmatpush1.msra.mxu0 0.0
    %1060 = vmatprep.subr.mxu0 0.0
    %1061 = vmatpush1.msra.mxu0 0.0
    %1062 = vmatprep.subr.mxu0 0.0
    %1063 = vmatpush1.msra.mxu0 0.0
    %1064 = vmatprep.subr.mxu0 0.0
    %1065 = vmatpush1.msra.mxu0 0.0
    %1066 = vmatprep.subr.mxu0 0.0
    %1067 = vmatpush1.msra.mxu0 0.0
    %1068 = vmatprep.subr.mxu0 0.0
    %1069 = vmatpush1.msra.mxu0 0.0
    %1070 = vmatprep.subr.mxu0 0.0
    %1071 = vmatpush1.msra.mxu0 0.0
    %1072 = vmatprep.subr.mxu0 0.0
    %1073 = vmatpush1.msra.mxu0 0.0
    %1074 = vmatprep.subr.mxu0 0.0
    %1075 = vmatpush1.msra.mxu0 0.0
    %1076 = vmatprep.subr.mxu0 0.0
    %1077 = vmatpush1.msra.mxu0 0.0
    %1078 = vmatprep.subr.mxu0 0.0
    %1079 = vmatpush1.msra.mxu0 0.0
    %1080 = vmatprep.subr.mxu0 0.0
    %1081 = vmatpush1.msra.mxu0 0.0
    %1082 = vmatprep.subr.mxu0 0.0
    %1083 = vmatpush1.msra.mxu0 0.0
    %1084 = vmatprep.subr.mxu0 0.0
    %1085 = vmatpush1.msra.mxu0 0.0
    %1086 = vmatprep.subr.mxu0 0.0
    %1087 = vmatpush1.msra.mxu0 0.0
    %1088 = vmatprep.subr.mxu0 0.0
    %1089 = vmatpush1.msra.mxu0 0.0
    %1090 = vmatprep.subr.mxu0 0.0
    %1091 = vmatpush1.msra.mxu0 0.0
    %1092 = vmatprep.subr.mxu0 0.0
    %1093 = vmatpush1.msra.mxu0 0.0
    %1094 = vmatprep.subr.mxu0 0.0
    %1095 = vmatpush1.msra.mxu0 0.0
    %1096 = vmatprep.subr.mxu0 0.0
    %1097 = vmatpush1.msra.mxu0 0.0
    %1098 = vmatprep.subr.mxu0 0.0
    %1099 = vmatpush1.msra.mxu0 0.0
    %1100 = vmatprep.subr.mxu0 0.0
    %1101 = vmatpush1.msra.mxu0 0.0
    %1102 = vmatprep.subr.mxu0 0.0
    %1103 = vmatpush1.msra.mxu0 0.0
    %1104 = vmatprep.subr.mxu0 0.0
    %1105 = vmatpush1.msra.mxu0 0.0
    %1106 = vmatprep.subr.mxu0 0.0
    %1107 = vmatpush1.msra.mxu0 0.0
    %1108 = vmatprep.subr.mxu0 0.0
    %1109 = vmatpush1.msra.mxu0 0.0
    %1110 = vmatprep.subr.mxu0 0.0
    %1111 = vmatpush1.msra.mxu0 0.0
    %1112 = vmatprep.subr.mxu0 0.0
    %1113 = vmatpush1.msra.mxu0 0.0
    %1114 = vmatprep.mubr.f32.mxu0 0.0
    %1115 = vmatmul.mubr.f32.gmra.mrb[0].mxu0 %v1045
    %v1116 = vpop.f32.mrb[0].mxu0
    %v1117 = vadd.f32 %v1042, %v1116
    %v1118 = vpop.f32.mrb[0].mxu0
    %1119 = vmatprep.mubr.f32.mxu0 0.0
    %1120 = vmatmul.mubr.f32.gmra.mrb[0].mxu0 %v1048
    %v1121 = vpop.f32.mrb[0].mxu0
    %v1122 = vadd.f32 %v1042, %v1121
    %v1123 = vpop.f32.mrb[0].mxu0
    %1124 = vdwg.mxu0
    %v1125 = vld [vmem:[%s5] sm:$0xff]
    %v1126 = vld [vmem:[%s5 + $0x8] sm:$0xff]
    %v1127 = vld [vmem:[%s5 + $0x10] sm:$0xff]
    %v1128 = vld [vmem:[%s5 + $0x18] sm:$0xff]
    %1129 = vmatprep.subr.mxu0 0.0
    %1130 = vmatpush1.msra.mxu0 %v1125
    %1131 = vmatprep.subr.mxu0 0.0
    %1132 = vmatpush1.msra.mxu0 %v1126
    %1133 = vmatprep.subr.mxu0 0.0
    %1134 = vmatpush1.msra.mxu0 %v1127
    %1135 = vmatprep.subr.mxu0 0.0
    %1136 = vmatpush1.msra.mxu0 %v1128
    %1137 = vmatprep.subr.mxu0 0.0
    %1138 = vmatpush1.msra.mxu0 0.0
    %1139 = vmatprep.subr.mxu0 0.0
    %1140 = vmatpush1.msra.mxu0 0.0
    %1141 = vmatprep.subr.mxu0 0.0
    %1142 = vmatpush1.msra.mxu0 0.0
    %1143 = vmatprep.subr.mxu0 0.0
    %1144 = vmatpush1.msra.mxu0 0.0
    %1145 = vmatprep.subr.mxu0 0.0
    %1146 = vmatpush1.msra.mxu0 0.0
    %1147 = vmatprep.subr.mxu0 0.0
    %1148 = vmatpush1.msra.mxu0 0.0
    %1149 = vmatprep.subr.mxu0 0.0
    %1150 = vmatpush1.msra.mxu0 0.0
    %1151 = vmatprep.subr.mxu0 0.0
    %1152 = vmatpush1.msra.mxu0 0.0
    %1153 = vmatprep.subr.mxu0 0.0
    %1154 = vmatpush1.msra.mxu0 0.0
    %1155 = vmatprep.subr.mxu0 0.0
    %1156 = vmatpush1.msra.mxu0 0.0
    %1157 = vmatprep.subr.mxu0 0.0
    %1158 = vmatpush1.msra.mxu0 0.0
    %1159 = vmatprep.subr.mxu0 0.0
    %1160 = vmatpush1.msra.mxu0 0.0
    %1161 = vmatprep.subr.mxu0 0.0
    %1162 = vmatpush1.msra.mxu0 0.0
    %1163 = vmatprep.subr.mxu0 0.0
    %1164 = vmatpush1.msra.mxu0 0.0
    %1165 = vmatprep.subr.mxu0 0.0
    %1166 = vmatpush1.msra.mxu0 0.0
    %1167 = vmatprep.subr.mxu0 0.0
    %1168 = vmatpush1.msra.mxu0 0.0
    %1169 = vmatprep.subr.mxu0 0.0
    %1170 = vmatpush1.msra.mxu0 0.0
    %1171 = vmatprep.subr.mxu0 0.0
    %1172 = vmatpush1.msra.mxu0 0.0
    %1173 = vmatprep.subr.mxu0 0.0
    %1174 = vmatpush1.msra.mxu0 0.0
    %1175 = vmatprep.subr.mxu0 0.0
    %1176 = vmatpush1.msra.mxu0 0.0
    %1177 = vmatprep.subr.mxu0 0.0
    %1178 = vmatpush1.msra.mxu0 0.0
    %1179 = vmatprep.subr.mxu0 0.0
    %1180 = vmatpush1.msra.mxu0 0.0
    %1181 = vmatprep.subr.mxu0 0.0
    %1182 = vmatpush1.msra.mxu0 0.0
    %1183 = vmatprep.subr.mxu0 0.0
    %1184 = vmatpush1.msra.mxu0 0.0
    %1185 = vmatprep.subr.mxu0 0.0
    %1186 = vmatpush1.msra.mxu0 0.0
    %1187 = vmatprep.subr.mxu0 0.0
    %1188 = vmatpush1.msra.mxu0 0.0
    %1189 = vmatprep.subr.mxu0 0.0
    %1190 = vmatpush1.msra.mxu0 0.0
    %1191 = vmatprep.subr.mxu0 0.0
    %1192 = vmatpush1.msra.mxu0 0.0
    %1193 = vmatprep.mubr.f32.mxu0 0.0
    %1194 = vmatmul.mubr.f32.gmra.mrb[0].mxu0 %v189
    %v1195 = vpop.f32.mrb[0].mxu0
    %v1196 = vadd.f32 0.0, %v1195
    %v1197 = vpop.f32.mrb[0].mxu0
    %1198 = vdwg.mxu0
    %v1199 = vadd.f32 %v1117, %v1196
    %v1200 = vxor.u32 %v1199, 2147483648
    %v1201 = vmul.f32 %v1200, 1.442695
    %v1202 = vpow.pop %v1201
    %v1203 = vadd.f32 %v1202, 1.0
    %v1204 = vrcp.pop %v1203
    %v1205 = vmul.f32 1.0, %v1204
    %v1206 = vtanh.pop %v1199
    %1207 = vrot.lane.b32.xlu0 %v1205, 96
    %v1208 = vpop.permute.xlu0 %1207
    %1209 = vrot.lane.b32.xlu0 %v1206, 64
    %v1210 = vpop.permute.xlu0 %1209
    %1211 = vrot.lane.b32.xlu0 %v1205, 32
    %v1212 = vpop.permute.xlu0 %1211
    %v1213 = vmul.f32 %v1208, 0.0
    %v1214 = vmul.f32 %v1205, %v1210
    %v1215 = vadd.f32 %v1213, %v1214
    %v1216 = vtanh.pop %v1215
    %v1217 = vmul.f32 %v1212, %v1216
    %v1219 = vsel %vm187, %v1217, 0
    %1221 = vmatprep.subr.mxu0 0.0
    %1222 = vmatpush1.msra.mxu0 %v1125
    %1223 = vmatprep.subr.mxu0 0.0
    %1224 = vmatpush1.msra.mxu0 %v1126
    %1225 = vmatprep.subr.mxu0 0.0
    %1226 = vmatpush1.msra.mxu0 %v1127
    %1227 = vmatprep.subr.mxu0 0.0
    %1228 = vmatpush1.msra.mxu0 %v1128
    %1229 = vmatprep.subr.mxu0 0.0
    %1230 = vmatpush1.msra.mxu0 0.0
    %1231 = vmatprep.subr.mxu0 0.0
    %1232 = vmatpush1.msra.mxu0 0.0
    %1233 = vmatprep.subr.mxu0 0.0
    %1234 = vmatpush1.msra.mxu0 0.0
    %1235 = vmatprep.subr.mxu0 0.0
    %1236 = vmatpush1.msra.mxu0 0.0
    %1237 = vmatprep.subr.mxu0 0.0
    %1238 = vmatpush1.msra.mxu0 0.0
    %1239 = vmatprep.subr.mxu0 0.0
    %1240 = vmatpush1.msra.mxu0 0.0
    %1241 = vmatprep.subr.mxu0 0.0
    %1242 = vmatpush1.msra.mxu0 0.0
    %1243 = vmatprep.subr.mxu0 0.0
    %1244 = vmatpush1.msra.mxu0 0.0
    %1245 = vmatprep.subr.mxu0 0.0
    %1246 = vmatpush1.msra.mxu0 0.0
    %1247 = vmatprep.subr.mxu0 0.0
    %1248 = vmatpush1.msra.mxu0 0.0
    %1249 = vmatprep.subr.mxu0 0.0
    %1250 = vmatpush1.msra.mxu0 0.0
    %1251 = vmatprep.subr.mxu0 0.0
    %1252 = vmatpush1.msra.mxu0 0.0
    %1253 = vmatprep.subr.mxu0 0.0
    %1254 = vmatpush1.msra.mxu0 0.0
    %1255 = vmatprep.subr.mxu0 0.0
    %1256 = vmatpush1.msra.mxu0 0.0
    %1257 = vmatprep.subr.mxu0 0.0
    %1258 = vmatpush1.msra.mxu0 0.0
    %1259 = vmatprep.subr.mxu0 0.0
    %1260 = vmatpush1.msra.mxu0 0.0
    %1261 = vmatprep.subr.mxu0 0.0
    %1262 = vmatpush1.msra.mxu0 0.0
    %1263 = vmatprep.subr.mxu0 0.0
    %1264 = vmatpush1.msra.mxu0 0.0
    %1265 = vmatprep.subr.mxu0 0.0
    %1266 = vmatpush1.msra.mxu0 0.0
    %1267 = vmatprep.subr.mxu0 0.0
    %1268 = vmatpush1.msra.mxu0 0.0
    %1269 = vmatprep.subr.mxu0 0.0
    %1270 = vmatpush1.msra.mxu0 0.0
    %1271 = vmatprep.subr.mxu0 0.0
    %1272 = vmatpush1.msra.mxu0 0.0
    %1273 = vmatprep.subr.mxu0 0.0
    %1274 = vmatpush1.msra.mxu0 0.0
    %1275 = vmatprep.subr.mxu0 0.0
    %1276 = vmatpush1.msra.mxu0 0.0
    %1277 = vmatprep.subr.mxu0 0.0
    %1278 = vmatpush1.msra.mxu0 0.0
    %1279 = vmatprep.subr.mxu0 0.0
    %1280 = vmatpush1.msra.mxu0 0.0
    %1281 = vmatprep.subr.mxu0 0.0
    %1282 = vmatpush1.msra.mxu0 0.0
    %1283 = vmatprep.subr.mxu0 0.0
    %1284 = vmatpush1.msra.mxu0 0.0
    %1285 = vmatprep.mubr.f32.mxu0 0.0
    %1286 = vmatmul.mubr.f32.gmra.mrb[0].mxu0 %v1219
    %v1287 = vpop.f32.mrb[0].mxu0
    %v1288 = vadd.f32 0.0, %v1287
    %v1289 = vpop.f32.mrb[0].mxu0
    %1290 = vdwg.mxu0
    %v1292 = vrot.slane %v1288, 6
    %v1294 = vadd.f32 %v1117, %v1292
    %v1295 = vxor.u32 %v1294, 2147483648
    %v1296 = vmul.f32 %v1295, 1.442695
    %v1297 = vpow.pop %v1296
    %v1298 = vadd.f32 %v1297, 1.0
    %v1299 = vrcp.pop %v1298
    %v1300 = vmul.f32 1.0, %v1299
    %v1301 = vtanh.pop %v1294
    %v1303 = vrot.slane %v1300, 2
    %1305 = vrot.lane.b32.xlu0 %v1303, 96
    %v1306 = vpop.permute.xlu0 %1305
    %v1308 = vrot.slane %v1301, 2
    %1310 = vrot.lane.b32.xlu0 %v1308, 64
    %v1311 = vpop.permute.xlu0 %1310
    %1312 = vrot.lane.b32.xlu0 %v1303, 32
    %v1313 = vpop.permute.xlu0 %1312
    %v1314 = vmul.f32 %v1306, %v1215
    %v1316 = vrot.slane %v1311, 6
    %v1318 = vmul.f32 %v1300, %v1316
    %v1320 = vrot.slane %v1318, 2
    %v1322 = vadd.f32 %v1314, %v1320
    %v1323 = vtanh.pop %v1322
    %v1324 = vmul.f32 %v1313, %v1323
    %v1326 = vsel %vm187, %v1324, 0
    %1328 = vmatprep.subr.mxu0 0.0
    %1329 = vmatpush1.msra.mxu0 %v1125
    %1330 = vmatprep.subr.mxu0 0.0
    %1331 = vmatpush1.msra.mxu0 %v1126
    %1332 = vmatprep.subr.mxu0 0.0
    %1333 = vmatpush1.msra.mxu0 %v1127
    %1334 = vmatprep.subr.mxu0 0.0
    %1335 = vmatpush1.msra.mxu0 %v1128
    %1336 = vmatprep.subr.mxu0 0.0
    %1337 = vmatpush1.msra.mxu0 0.0
    %1338 = vmatprep.subr.mxu0 0.0
    %1339 = vmatpush1.msra.mxu0 0.0
    %1340 = vmatprep.subr.mxu0 0.0
    %1341 = vmatpush1.msra.mxu0 0.0
    %1342 = vmatprep.subr.mxu0 0.0
    %1343 = vmatpush1.msra.mxu0 0.0
    %1344 = vmatprep.subr.mxu0 0.0
    %1345 = vmatpush1.msra.mxu0 0.0
    %1346 = vmatprep.subr.mxu0 0.0
    %1347 = vmatpush1.msra.mxu0 0.0
    %1348 = vmatprep.subr.mxu0 0.0
    %1349 = vmatpush1.msra.mxu0 0.0
    %1350 = vmatprep.subr.mxu0 0.0
    %1351 = vmatpush1.msra.mxu0 0.0
    %1352 = vmatprep.subr.mxu0 0.0
    %1353 = vmatpush1.msra.mxu0 0.0
    %1354 = vmatprep.subr.mxu0 0.0
    %1355 = vmatpush1.msra.mxu0 0.0
    %1356 = vmatprep.subr.mxu0 0.0
    %1357 = vmatpush1.msra.mxu0 0.0
    %1358 = vmatprep.subr.mxu0 0.0
    %1359 = vmatpush1.msra.mxu0 0.0
    %1360 = vmatprep.subr.mxu0 0.0
    %1361 = vmatpush1.msra.mxu0 0.0
    %1362 = vmatprep.subr.mxu0 0.0
    %1363 = vmatpush1.msra.mxu0 0.0
    %1364 = vmatprep.subr.mxu0 0.0
    %1365 = vmatpush1.msra.mxu0 0.0
    %1366 = vmatprep.subr.mxu0 0.0
    %1367 = vmatpush1.msra.mxu0 0.0
    %1368 = vmatprep.subr.mxu0 0.0
    %1369 = vmatpush1.msra.mxu0 0.0
    %1370 = vmatprep.subr.mxu0 0.0
    %1371 = vmatpush1.msra.mxu0 0.0
    %1372 = vmatprep.subr.mxu0 0.0
    %1373 = vmatpush1.msra.mxu0 0.0
    %1374 = vmatprep.subr.mxu0 0.0
    %1375 = vmatpush1.msra.mxu0 0.0
    %1376 = vmatprep.subr.mxu0 0.0
    %1377 = vmatpush1.msra.mxu0 0.0
    %1378 = vmatprep.subr.mxu0 0.0
    %1379 = vmatpush1.msra.mxu0 0.0
    %1380 = vmatprep.subr.mxu0 0.0
    %1381 = vmatpush1.msra.mxu0 0.0
    %1382 = vmatprep.subr.mxu0 0.0
    %1383 = vmatpush1.msra.mxu0 0.0
    %1384 = vmatprep.subr.mxu0 0.0
    %1385 = vmatpush1.msra.mxu0 0.0
    %1386 = vmatprep.subr.mxu0 0.0
    %1387 = vmatpush1.msra.mxu0 0.0
    %1388 = vmatprep.subr.mxu0 0.0
    %1389 = vmatpush1.msra.mxu0 0.0
    %1390 = vmatprep.subr.mxu0 0.0
    %1391 = vmatpush1.msra.mxu0 0.0
    %1392 = vmatprep.mubr.f32.mxu0 0.0
    %1393 = vmatmul.mubr.f32.gmra.mrb[0].mxu0 %v1326
    %v1394 = vpop.f32.mrb[0].mxu0
    %v1395 = vadd.f32 0.0, %v1394
    %v1396 = vpop.f32.mrb[0].mxu0
    %1397 = vdwg.mxu0
    %v1399 = vrot.slane %v1395, 4
    %v1401 = vadd.f32 %v1117, %v1399
    %v1402 = vxor.u32 %v1401, 2147483648
    %v1403 = vmul.f32 %v1402, 1.442695
    %v1404 = vpow.pop %v1403
    %v1405 = vadd.f32 %v1404, 1.0
    %v1406 = vrcp.pop %v1405
    %v1407 = vmul.f32 1.0, %v1406
    %v1408 = vtanh.pop %v1401
    %v1410 = vrot.slane %v1407, 4
    %1412 = vrot.lane.b32.xlu0 %v1410, 96
    %v1413 = vpop.permute.xlu0 %1412
    %v1415 = vrot.slane %v1408, 4
    %1417 = vrot.lane.b32.xlu0 %v1415, 64
    %v1418 = vpop.permute.xlu0 %1417
    %1419 = vrot.lane.b32.xlu0 %v1410, 32
    %v1420 = vpop.permute.xlu0 %1419
    %v1421 = vmul.f32 %v1413, %v1322
    %v1423 = vrot.slane %v1418, 4
    %v1425 = vmul.f32 %v1407, %v1423
    %v1427 = vrot.slane %v1425, 4
    %v1429 = vadd.f32 %v1421, %v1427
    %v1430 = vtanh.pop %v1429
    %v1431 = vmul.f32 %v1420, %v1430
    %v1433 = vsel %vm187, %v1431, 0
    %1435 = vmatprep.subr.mxu0 0.0
    %1436 = vmatpush1.msra.mxu0 %v1125
    %1437 = vmatprep.subr.mxu0 0.0
    %1438 = vmatpush1.msra.mxu0 %v1126
    %1439 = vmatprep.subr.mxu0 0.0
    %1440 = vmatpush1.msra.mxu0 %v1127
    %1441 = vmatprep.subr.mxu0 0.0
    %1442 = vmatpush1.msra.mxu0 %v1128
    %1443 = vmatprep.subr.mxu0 0.0
    %1444 = vmatpush1.msra.mxu0 0.0
    %1445 = vmatprep.subr.mxu0 0.0
    %1446 = vmatpush1.msra.mxu0 0.0
    %1447 = vmatprep.subr.mxu0 0.0
    %1448 = vmatpush1.msra.mxu0 0.0
    %1449 = vmatprep.subr.mxu0 0.0
    %1450 = vmatpush1.msra.mxu0 0.0
    %1451 = vmatprep.subr.mxu0 0.0
    %1452 = vmatpush1.msra.mxu0 0.0
    %1453 = vmatprep.subr.mxu0 0.0
    %1454 = vmatpush1.msra.mxu0 0.0
    %1455 = vmatprep.subr.mxu0 0.0
    %1456 = vmatpush1.msra.mxu0 0.0
    %1457 = vmatprep.subr.mxu0 0.0
    %1458 = vmatpush1.msra.mxu0 0.0
    %1459 = vmatprep.subr.mxu0 0.0
    %1460 = vmatpush1.msra.mxu0 0.0
    %1461 = vmatprep.subr.mxu0 0.0
    %1462 = vmatpush1.msra.mxu0 0.0
    %1463 = vmatprep.subr.mxu0 0.0
    %1464 = vmatpush1.msra.mxu0 0.0
    %1465 = vmatprep.subr.mxu0 0.0
    %1466 = vmatpush1.msra.mxu0 0.0
    %1467 = vmatprep.subr.mxu0 0.0
    %1468 = vmatpush1.msra.mxu0 0.0
    %1469 = vmatprep.subr.mxu0 0.0
    %1470 = vmatpush1.msra.mxu0 0.0
    %1471 = vmatprep.subr.mxu0 0.0
    %1472 = vmatpush1.msra.mxu0 0.0
    %1473 = vmatprep.subr.mxu0 0.0
    %1474 = vmatpush1.msra.mxu0 0.0
    %1475 = vmatprep.subr.mxu0 0.0
    %1476 = vmatpush1.msra.mxu0 0.0
    %1477 = vmatprep.subr.mxu0 0.0
    %1478 = vmatpush1.msra.mxu0 0.0
    %1479 = vmatprep.subr.mxu0 0.0
    %1480 = vmatpush1.msra.mxu0 0.0
    %1481 = vmatprep.subr.mxu0 0.0
    %1482 = vmatpush1.msra.mxu0 0.0
    %1483 = vmatprep.subr.mxu0 0.0
    %1484 = vmatpush1.msra.mxu0 0.0
    %1485 = vmatprep.subr.mxu0 0.0
    %1486 = vmatpush1.msra.mxu0 0.0
    %1487 = vmatprep.subr.mxu0 0.0
    %1488 = vmatpush1.msra.mxu0 0.0
    %1489 = vmatprep.subr.mxu0 0.0
    %1490 = vmatpush1.msra.mxu0 0.0
    %1491 = vmatprep.subr.mxu0 0.0
    %1492 = vmatpush1.msra.mxu0 0.0
    %1493 = vmatprep.subr.mxu0 0.0
    %1494 = vmatpush1.msra.mxu0 0.0
    %1495 = vmatprep.subr.mxu0 0.0
    %1496 = vmatpush1.msra.mxu0 0.0
    %1497 = vmatprep.subr.mxu0 0.0
    %1498 = vmatpush1.msra.mxu0 0.0
    %1499 = vmatprep.mubr.f32.mxu0 0.0
    %1500 = vmatmul.mubr.f32.gmra.mrb[0].mxu0 %v1433
    %v1501 = vpop.f32.mrb[0].mxu0
    %v1502 = vadd.f32 0.0, %v1501
    %v1503 = vpop.f32.mrb[0].mxu0
    %1504 = vdwg.mxu0
    %v1506 = vrot.slane %v1502, 2
    %v1508 = vadd.f32 %v1117, %v1506
    %v1509 = vxor.u32 %v1508, 2147483648
    %v1510 = vmul.f32 %v1509, 1.442695
    %v1511 = vpow.pop %v1510
    %v1512 = vadd.f32 %v1511, 1.0
    %v1513 = vrcp.pop %v1512
    %v1514 = vmul.f32 1.0, %v1513
    %v1515 = vtanh.pop %v1508
    %v1517 = vrot.slane %v1514, 6
    %1519 = vrot.lane.b32.xlu0 %v1517, 96
    %v1520 = vpop.permute.xlu0 %1519
    %v1522 = vrot.slane %v1515, 6
    %1524 = vrot.lane.b32.xlu0 %v1522, 64
    %v1525 = vpop.permute.xlu0 %1524
    %1526 = vrot.lane.b32.xlu0 %v1517, 32
    %v1527 = vpop.permute.xlu0 %1526
    %v1528 = vmul.f32 %v1520, %v1429
    %v1530 = vrot.slane %v1525, 2
    %v1532 = vmul.f32 %v1514, %v1530
    %v1534 = vrot.slane %v1532, 6
    %v1536 = vadd.f32 %v1528, %v1534
    %v1537 = vtanh.pop %v1536
    %v1538 = vmul.f32 %v1527, %v1537
    %v1540 = vsel %vm187, %v1538, 0
    %1542 = vmatprep.subr.mxu0 0.0
    %1543 = vmatpush1.msra.mxu0 %v1125
    %1544 = vmatprep.subr.mxu0 0.0
    %1545 = vmatpush1.msra.mxu0 %v1126
    %1546 = vmatprep.subr.mxu0 0.0
    %1547 = vmatpush1.msra.mxu0 %v1127
    %1548 = vmatprep.subr.mxu0 0.0
    %1549 = vmatpush1.msra.mxu0 %v1128
    %1550 = vmatprep.subr.mxu0 0.0
    %1551 = vmatpush1.msra.mxu0 0.0
    %1552 = vmatprep.subr.mxu0 0.0
    %1553 = vmatpush1.msra.mxu0 0.0
    %1554 = vmatprep.subr.mxu0 0.0
    %1555 = vmatpush1.msra.mxu0 0.0
    %1556 = vmatprep.subr.mxu0 0.0
    %1557 = vmatpush1.msra.mxu0 0.0
    %1558 = vmatprep.subr.mxu0 0.0
    %1559 = vmatpush1.msra.mxu0 0.0
    %1560 = vmatprep.subr.mxu0 0.0
    %1561 = vmatpush1.msra.mxu0 0.0
    %1562 = vmatprep.subr.mxu0 0.0
    %1563 = vmatpush1.msra.mxu0 0.0
    %1564 = vmatprep.subr.mxu0 0.0
    %1565 = vmatpush1.msra.mxu0 0.0
    %1566 = vmatprep.subr.mxu0 0.0
    %1567 = vmatpush1.msra.mxu0 0.0
    %1568 = vmatprep.subr.mxu0 0.0
    %1569 = vmatpush1.msra.mxu0 0.0
    %1570 = vmatprep.subr.mxu0 0.0
    %1571 = vmatpush1.msra.mxu0 0.0
    %1572 = vmatprep.subr.mxu0 0.0
    %1573 = vmatpush1.msra.mxu0 0.0
    %1574 = vmatprep.subr.mxu0 0.0
    %1575 = vmatpush1.msra.mxu0 0.0
    %1576 = vmatprep.subr.mxu0 0.0
    %1577 = vmatpush1.msra.mxu0 0.0
    %1578 = vmatprep.subr.mxu0 0.0
    %1579 = vmatpush1.msra.mxu0 0.0
    %1580 = vmatprep.subr.mxu0 0.0
    %1581 = vmatpush1.msra.mxu0 0.0
    %1582 = vmatprep.subr.mxu0 0.0
    %1583 = vmatpush1.msra.mxu0 0.0
    %1584 = vmatprep.subr.mxu0 0.0
    %1585 = vmatpush1.msra.mxu0 0.0
    %1586 = vmatprep.subr.mxu0 0.0
    %1587 = vmatpush1.msra.mxu0 0.0
    %1588 = vmatprep.subr.mxu0 0.0
    %1589 = vmatpush1.msra.mxu0 0.0
    %1590 = vmatprep.subr.mxu0 0.0
    %1591 = vmatpush1.msra.mxu0 0.0
    %1592 = vmatprep.subr.mxu0 0.0
    %1593 = vmatpush1.msra.mxu0 0.0
    %1594 = vmatprep.subr.mxu0 0.0
    %1595 = vmatpush1.msra.mxu0 0.0
    %1596 = vmatprep.subr.mxu0 0.0
    %1597 = vmatpush1.msra.mxu0 0.0
    %1598 = vmatprep.subr.mxu0 0.0
    %1599 = vmatpush1.msra.mxu0 0.0
    %1600 = vmatprep.subr.mxu0 0.0
    %1601 = vmatpush1.msra.mxu0 0.0
    %1602 = vmatprep.subr.mxu0 0.0
    %1603 = vmatpush1.msra.mxu0 0.0
    %1604 = vmatprep.subr.mxu0 0.0
    %1605 = vmatpush1.msra.mxu0 0.0
    %1606 = vmatprep.mubr.f32.mxu0 0.0
    %1607 = vmatmul.mubr.f32.gmra.mrb[0].mxu0 %v1540
    %v1608 = vpop.f32.mrb[0].mxu0
    %v1609 = vadd.f32 0.0, %v1608
    %v1610 = vpop.f32.mrb[0].mxu0
    %1611 = vdwg.mxu0
    %v1612 = vadd.f32 %v1122, %v1609
    %v1613 = vxor.u32 %v1612, 2147483648
    %v1614 = vmul.f32 %v1613, 1.442695
    %v1615 = vpow.pop %v1614
    %v1616 = vadd.f32 %v1615, 1.0
    %v1617 = vrcp.pop %v1616
    %v1618 = vmul.f32 1.0, %v1617
    %v1619 = vtanh.pop %v1612
    %1620 = vrot.lane.b32.xlu0 %v1618, 96
    %v1621 = vpop.permute.xlu0 %1620
    %1622 = vrot.lane.b32.xlu0 %v1619, 64
    %v1623 = vpop.permute.xlu0 %1622
    %1624 = vrot.lane.b32.xlu0 %v1618, 32
    %v1625 = vpop.permute.xlu0 %1624
    %v1626 = vmul.f32 %v1621, %v1536
    %v1627 = vmul.f32 %v1618, %v1623
    %v1628 = vadd.f32 %v1626, %v1627
    %v1629 = vtanh.pop %v1628
    %v1630 = vmul.f32 %v1625, %v1629
    %v1632 = vsel %vm187, %v1630, 0
    %1634 = vmatprep.subr.mxu0 0.0
    %1635 = vmatpush1.msra.mxu0 %v1125
    %1636 = vmatprep.subr.mxu0 0.0
    %1637 = vmatpush1.msra.mxu0 %v1126
    %1638 = vmatprep.subr.mxu0 0.0
    %1639 = vmatpush1.msra.mxu0 %v1127
    %1640 = vmatprep.subr.mxu0 0.0
    %1641 = vmatpush1.msra.mxu0 %v1128
    %1642 = vmatprep.subr.mxu0 0.0
    %1643 = vmatpush1.msra.mxu0 0.0
    %1644 = vmatprep.subr.mxu0 0.0
    %1645 = vmatpush1.msra.mxu0 0.0
    %1646 = vmatprep.subr.mxu0 0.0
    %1647 = vmatpush1.msra.mxu0 0.0
    %1648 = vmatprep.subr.mxu0 0.0
    %1649 = vmatpush1.msra.mxu0 0.0
    %1650 = vmatprep.subr.mxu0 0.0
    %1651 = vmatpush1.msra.mxu0 0.0
    %1652 = vmatprep.subr.mxu0 0.0
    %1653 = vmatpush1.msra.mxu0 0.0
    %1654 = vmatprep.subr.mxu0 0.0
    %1655 = vmatpush1.msra.mxu0 0.0
    %1656 = vmatprep.subr.mxu0 0.0
    %1657 = vmatpush1.msra.mxu0 0.0
    %1658 = vmatprep.subr.mxu0 0.0
    %1659 = vmatpush1.msra.mxu0 0.0
    %1660 = vmatprep.subr.mxu0 0.0
    %1661 = vmatpush1.msra.mxu0 0.0
    %1662 = vmatprep.subr.mxu0 0.0
    %1663 = vmatpush1.msra.mxu0 0.0
    %1664 = vmatprep.subr.mxu0 0.0
    %1665 = vmatpush1.msra.mxu0 0.0
    %1666 = vmatprep.subr.mxu0 0.0
    %1667 = vmatpush1.msra.mxu0 0.0
    %1668 = vmatprep.subr.mxu0 0.0
    %1669 = vmatpush1.msra.mxu0 0.0
    %1670 = vmatprep.subr.mxu0 0.0
    %1671 = vmatpush1.msra.mxu0 0.0
    %1672 = vmatprep.subr.mxu0 0.0
    %1673 = vmatpush1.msra.mxu0 0.0
    %1674 = vmatprep.subr.mxu0 0.0
    %1675 = vmatpush1.msra.mxu0 0.0
    %1676 = vmatprep.subr.mxu0 0.0
    %1677 = vmatpush1.msra.mxu0 0.0
    %1678 = vmatprep.subr.mxu0 0.0
    %1679 = vmatpush1.msra.mxu0 0.0
    %1680 = vmatprep.subr.mxu0 0.0
    %1681 = vmatpush1.msra.mxu0 0.0
    %1682 = vmatprep.subr.mxu0 0.0
    %1683 = vmatpush1.msra.mxu0 0.0
    %1684 = vmatprep.subr.mxu0 0.0
    %1685 = vmatpush1.msra.mxu0 0.0
    %1686 = vmatprep.subr.mxu0 0.0
    %1687 = vmatpush1.msra.mxu0 0.0
    %1688 = vmatprep.subr.mxu0 0.0
    %1689 = vmatpush1.msra.mxu0 0.0
    %1690 = vmatprep.subr.mxu0 0.0
    %1691 = vmatpush1.msra.mxu0 0.0
    %1692 = vmatprep.subr.mxu0 0.0
    %1693 = vmatpush1.msra.mxu0 0.0
    %1694 = vmatprep.subr.mxu0 0.0
    %1695 = vmatpush1.msra.mxu0 0.0
    %1696 = vmatprep.subr.mxu0 0.0
    %1697 = vmatpush1.msra.mxu0 0.0
    %1698 = vmatprep.mubr.f32.mxu0 0.0
    %1699 = vmatmul.mubr.f32.gmra.mrb[0].mxu0 %v1632
    %v1700 = vpop.f32.mrb[0].mxu0
    %v1701 = vadd.f32 0.0, %v1700
    %v1702 = vpop.f32.mrb[0].mxu0
    %1703 = vdwg.mxu0
    %v1705 = vrot.slane %v1701, 6
    %v1707 = vadd.f32 %v1122, %v1705
    %v1708 = vxor.u32 %v1707, 2147483648
    %v1709 = vmul.f32 %v1708, 1.442695
    %v1710 = vpow.pop %v1709
    %v1711 = vadd.f32 %v1710, 1.0
    %v1712 = vrcp.pop %v1711
    %v1713 = vmul.f32 1.0, %v1712
    %v1714 = vtanh.pop %v1707
    %v1716 = vrot.slane %v1713, 2
    %1718 = vrot.lane.b32.xlu0 %v1716, 96
    %v1719 = vpop.permute.xlu0 %1718
    %v1721 = vrot.slane %v1714, 2
    %1723 = vrot.lane.b32.xlu0 %v1721, 64
    %v1724 = vpop.permute.xlu0 %1723
    %1725 = vrot.lane.b32.xlu0 %v1716, 32
    %v1726 = vpop.permute.xlu0 %1725
    %v1727 = vmul.f32 %v1719, %v1628
    %v1729 = vrot.slane %v1724, 6
    %v1731 = vmul.f32 %v1713, %v1729
    %v1733 = vrot.slane %v1731, 2
    %v1735 = vadd.f32 %v1727, %v1733
    %v1736 = vtanh.pop %v1735
    %v1737 = vmul.f32 %v1726, %v1736
    %v1739 = vsel %vm187, %v1737, 0
    %1741 = vmatprep.subr.mxu0 0.0
    %1742 = vmatpush1.msra.mxu0 %v1125
    %1743 = vmatprep.subr.mxu0 0.0
    %1744 = vmatpush1.msra.mxu0 %v1126
    %1745 = vmatprep.subr.mxu0 0.0
    %1746 = vmatpush1.msra.mxu0 %v1127
    %1747 = vmatprep.subr.mxu0 0.0
    %1748 = vmatpush1.msra.mxu0 %v1128
    %1749 = vmatprep.subr.mxu0 0.0
    %1750 = vmatpush1.msra.mxu0 0.0
    %1751 = vmatprep.subr.mxu0 0.0
    %1752 = vmatpush1.msra.mxu0 0.0
    %1753 = vmatprep.subr.mxu0 0.0
    %1754 = vmatpush1.msra.mxu0 0.0
    %1755 = vmatprep.subr.mxu0 0.0
    %1756 = vmatpush1.msra.mxu0 0.0
    %1757 = vmatprep.subr.mxu0 0.0
    %1758 = vmatpush1.msra.mxu0 0.0
    %1759 = vmatprep.subr.mxu0 0.0
    %1760 = vmatpush1.msra.mxu0 0.0
    %1761 = vmatprep.subr.mxu0 0.0
    %1762 = vmatpush1.msra.mxu0 0.0
    %1763 = vmatprep.subr.mxu0 0.0
    %1764 = vmatpush1.msra.mxu0 0.0
    %1765 = vmatprep.subr.mxu0 0.0
    %1766 = vmatpush1.msra.mxu0 0.0
    %1767 = vmatprep.subr.mxu0 0.0
    %1768 = vmatpush1.msra.mxu0 0.0
    %1769 = vmatprep.subr.mxu0 0.0
    %1770 = vmatpush1.msra.mxu0 0.0
    %1771 = vmatprep.subr.mxu0 0.0
    %1772 = vmatpush1.msra.mxu0 0.0
    %1773 = vmatprep.subr.mxu0 0.0
    %1774 = vmatpush1.msra.mxu0 0.0
    %1775 = vmatprep.subr.mxu0 0.0
    %1776 = vmatpush1.msra.mxu0 0.0
    %1777 = vmatprep.subr.mxu0 0.0
    %1778 = vmatpush1.msra.mxu0 0.0
    %1779 = vmatprep.subr.mxu0 0.0
    %1780 = vmatpush1.msra.mxu0 0.0
    %1781 = vmatprep.subr.mxu0 0.0
    %1782 = vmatpush1.msra.mxu0 0.0
    %1783 = vmatprep.subr.mxu0 0.0
    %1784 = vmatpush1.msra.mxu0 0.0
    %1785 = vmatprep.subr.mxu0 0.0
    %1786 = vmatpush1.msra.mxu0 0.0
    %1787 = vmatprep.subr.mxu0 0.0
    %1788 = vmatpush1.msra.mxu0 0.0
    %1789 = vmatprep.subr.mxu0 0.0
    %1790 = vmatpush1.msra.mxu0 0.0
    %1791 = vmatprep.subr.mxu0 0.0
    %1792 = vmatpush1.msra.mxu0 0.0
    %1793 = vmatprep.subr.mxu0 0.0
    %1794 = vmatpush1.msra.mxu0 0.0
    %1795 = vmatprep.subr.mxu0 0.0
    %1796 = vmatpush1.msra.mxu0 0.0
    %1797 = vmatprep.subr.mxu0 0.0
    %1798 = vmatpush1.msra.mxu0 0.0
    %1799 = vmatprep.subr.mxu0 0.0
    %1800 = vmatpush1.msra.mxu0 0.0
    %1801 = vmatprep.subr.mxu0 0.0
    %1802 = vmatpush1.msra.mxu0 0.0
    %1803 = vmatprep.subr.mxu0 0.0
    %1804 = vmatpush1.msra.mxu0 0.0
    %1805 = vmatprep.mubr.f32.mxu0 0.0
    %1806 = vmatmul.mubr.f32.gmra.mrb[0].mxu0 %v1739
    %v1807 = vpop.f32.mrb[0].mxu0
    %v1808 = vadd.f32 0.0, %v1807
    %v1809 = vpop.f32.mrb[0].mxu0
    %1810 = vdwg.mxu0
    %v1812 = vrot.slane %v1808, 4
    %v1814 = vadd.f32 %v1122, %v1812
    %v1815 = vxor.u32 %v1814, 2147483648
    %v1816 = vmul.f32 %v1815, 1.442695
    %v1817 = vpow.pop %v1816
    %v1818 = vadd.f32 %v1817, 1.0
    %v1819 = vrcp.pop %v1818
    %v1820 = vmul.f32 1.0, %v1819
    %v1821 = vtanh.pop %v1814
    %v1823 = vrot.slane %v1820, 4
    %1825 = vrot.lane.b32.xlu0 %v1823, 96
    %v1826 = vpop.permute.xlu0 %1825
    %v1828 = vrot.slane %v1821, 4
    %1830 = vrot.lane.b32.xlu0 %v1828, 64
    %v1831 = vpop.permute.xlu0 %1830
    %1832 = vrot.lane.b32.xlu0 %v1823, 32
    %v1833 = vpop.permute.xlu0 %1832
    %v1834 = vmul.f32 %v1826, %v1735
    %v1836 = vrot.slane %v1831, 4
    %v1838 = vmul.f32 %v1820, %v1836
    %v1840 = vrot.slane %v1838, 4
    %v1842 = vadd.f32 %v1834, %v1840
    %v1843 = vtanh.pop %v1842
    %v1844 = vmul.f32 %v1833, %v1843
    %v1846 = vsel %vm187, %v1844, 0
    %1848 = vmatprep.subr.mxu0 0.0
    %1849 = vmatpush1.msra.mxu0 %v1125
    %1850 = vmatprep.subr.mxu0 0.0
    %1851 = vmatpush1.msra.mxu0 %v1126
    %1852 = vmatprep.subr.mxu0 0.0
    %1853 = vmatpush1.msra.mxu0 %v1127
    %1854 = vmatprep.subr.mxu0 0.0
    %1855 = vmatpush1.msra.mxu0 %v1128
    %1856 = vmatprep.subr.mxu0 0.0
    %1857 = vmatpush1.msra.mxu0 0.0
    %1858 = vmatprep.subr.mxu0 0.0
    %1859 = vmatpush1.msra.mxu0 0.0
    %1860 = vmatprep.subr.mxu0 0.0
    %1861 = vmatpush1.msra.mxu0 0.0
    %1862 = vmatprep.subr.mxu0 0.0
    %1863 = vmatpush1.msra.mxu0 0.0
    %1864 = vmatprep.subr.mxu0 0.0
    %1865 = vmatpush1.msra.mxu0 0.0
    %1866 = vmatprep.subr.mxu0 0.0
    %1867 = vmatpush1.msra.mxu0 0.0
    %1868 = vmatprep.subr.mxu0 0.0
    %1869 = vmatpush1.msra.mxu0 0.0
    %1870 = vmatprep.subr.mxu0 0.0
    %1871 = vmatpush1.msra.mxu0 0.0
    %1872 = vmatprep.subr.mxu0 0.0
    %1873 = vmatpush1.msra.mxu0 0.0
    %1874 = vmatprep.subr.mxu0 0.0
    %1875 = vmatpush1.msra.mxu0 0.0
    %1876 = vmatprep.subr.mxu0 0.0
    %1877 = vmatpush1.msra.mxu0 0.0
    %1878 = vmatprep.subr.mxu0 0.0
    %1879 = vmatpush1.msra.mxu0 0.0
    %1880 = vmatprep.subr.mxu0 0.0
    %1881 = vmatpush1.msra.mxu0 0.0
    %1882 = vmatprep.subr.mxu0 0.0
    %1883 = vmatpush1.msra.mxu0 0.0
    %1884 = vmatprep.subr.mxu0 0.0
    %1885 = vmatpush1.msra.mxu0 0.0
    %1886 = vmatprep.subr.mxu0 0.0
    %1887 = vmatpush1.msra.mxu0 0.0
    %1888 = vmatprep.subr.mxu0 0.0
    %1889 = vmatpush1.msra.mxu0 0.0
    %1890 = vmatprep.subr.mxu0 0.0
    %1891 = vmatpush1.msra.mxu0 0.0
    %1892 = vmatprep.subr.mxu0 0.0
    %1893 = vmatpush1.msra.mxu0 0.0
    %1894 = vmatprep.subr.mxu0 0.0
    %1895 = vmatpush1.msra.mxu0 0.0
    %1896 = vmatprep.subr.mxu0 0.0
    %1897 = vmatpush1.msra.mxu0 0.0
    %1898 = vmatprep.subr.mxu0 0.0
    %1899 = vmatpush1.msra.mxu0 0.0
    %1900 = vmatprep.subr.mxu0 0.0
    %1901 = vmatpush1.msra.mxu0 0.0
    %1902 = vmatprep.subr.mxu0 0.0
    %1903 = vmatpush1.msra.mxu0 0.0
    %1904 = vmatprep.subr.mxu0 0.0
    %1905 = vmatpush1.msra.mxu0 0.0
    %1906 = vmatprep.subr.mxu0 0.0
    %1907 = vmatpush1.msra.mxu0 0.0
    %1908 = vmatprep.subr.mxu0 0.0
    %1909 = vmatpush1.msra.mxu0 0.0
    %1910 = vmatprep.subr.mxu0 0.0
    %1911 = vmatpush1.msra.mxu0 0.0
    %1912 = vmatprep.mubr.f32.mxu0 0.0
    %1913 = vmatmul.mubr.f32.gmra.mrb[0].mxu0 %v1846
    %v1914 = vpop.f32.mrb[0].mxu0
    %v1915 = vadd.f32 0.0, %v1914
    %v1916 = vpop.f32.mrb[0].mxu0
    %1917 = vdwg.mxu0
    %v1919 = vrot.slane %v1915, 2
    %v1921 = vadd.f32 %v1122, %v1919
    %v1922 = vxor.u32 %v1921, 2147483648
    %v1923 = vmul.f32 %v1922, 1.442695
    %v1924 = vpow.pop %v1923
    %v1925 = vadd.f32 %v1924, 1.0
    %v1926 = vrcp.pop %v1925
    %v1927 = vmul.f32 1.0, %v1926
    %v1928 = vtanh.pop %v1921
    %v1930 = vrot.slane %v1927, 6
    %1932 = vrot.lane.b32.xlu0 %v1930, 96
    %v1933 = vpop.permute.xlu0 %1932
    %v1935 = vrot.slane %v1928, 6
    %1937 = vrot.lane.b32.xlu0 %v1935, 64
    %v1938 = vpop.permute.xlu0 %1937
    %1939 = vrot.lane.b32.xlu0 %v1930, 32
    %v1940 = vpop.permute.xlu0 %1939
    %v1941 = vmul.f32 %v1933, %v1842
    %v1943 = vrot.slane %v1938, 2
    %v1945 = vmul.f32 %v1927, %v1943
    %v1947 = vrot.slane %v1945, 6
    %v1949 = vadd.f32 %v1941, %v1947
    %v1950 = vtanh.pop %v1949
    %v1951 = vmul.f32 %v1940, %v1950
    %v1952 = vmax.f32 %v1951, 0.0
    %v1953 = vld [vmem:[#allocation6] sm:$0xff]
    %v1954 = vld [vmem:[#allocation6 + $0x8] sm:$0xff]
    %v1955 = vld [vmem:[#allocation6 + $0x10] sm:$0xff]
    %v1956 = vld [vmem:[#allocation6 + $0x18] sm:$0xff]
    %v1957 = vld [vmem:[#allocation8] sm:$0x1]
    %v1959 = vlaneseq
    %v1960 = vshrl.u32 %v1959, 7
    %v1961 = vsub.s32 0, %v1960
    %v1962 = vrot.slane %v1957, %v1961
    %v1965 = vsel %vm187, %v1952, 0
    %1967 = vmatprep.subr.mxu0 0.0
    %1968 = vmatpush1.msra.mxu0 %v1953
    %1969 = vmatprep.subr.mxu0 0.0
    %1970 = vmatpush1.msra.mxu0 %v1954
    %1971 = vmatprep.subr.mxu0 0.0
    %1972 = vmatpush1.msra.mxu0 %v1955
    %1973 = vmatprep.subr.mxu0 0.0
    %1974 = vmatpush1.msra.mxu0 %v1956
    %1975 = vmatprep.subr.mxu0 0.0
    %1976 = vmatpush1.msra.mxu0 0.0
    %1977 = vmatprep.subr.mxu0 0.0
    %1978 = vmatpush1.msra.mxu0 0.0
    %1979 = vmatprep.subr.mxu0 0.0
    %1980 = vmatpush1.msra.mxu0 0.0
    %1981 = vmatprep.subr.mxu0 0.0
    %1982 = vmatpush1.msra.mxu0 0.0
    %1983 = vmatprep.subr.mxu0 0.0
    %1984 = vmatpush1.msra.mxu0 0.0
    %1985 = vmatprep.subr.mxu0 0.0
    %1986 = vmatpush1.msra.mxu0 0.0
    %1987 = vmatprep.subr.mxu0 0.0
    %1988 = vmatpush1.msra.mxu0 0.0
    %1989 = vmatprep.subr.mxu0 0.0
    %1990 = vmatpush1.msra.mxu0 0.0
    %1991 = vmatprep.subr.mxu0 0.0
    %1992 = vmatpush1.msra.mxu0 0.0
    %1993 = vmatprep.subr.mxu0 0.0
    %1994 = vmatpush1.msra.mxu0 0.0
    %1995 = vmatprep.subr.mxu0 0.0
    %1996 = vmatpush1.msra.mxu0 0.0
    %1997 = vmatprep.subr.mxu0 0.0
    %1998 = vmatpush1.msra.mxu0 0.0
    %1999 = vmatprep.subr.mxu0 0.0
    %2000 = vmatpush1.msra.mxu0 0.0
    %2001 = vmatprep.subr.mxu0 0.0
    %2002 = vmatpush1.msra.mxu0 0.0
    %2003 = vmatprep.subr.mxu0 0.0
    %2004 = vmatpush1.msra.mxu0 0.0
    %2005 = vmatprep.subr.mxu0 0.0
    %2006 = vmatpush1.msra.mxu0 0.0
    %2007 = vmatprep.subr.mxu0 0.0
    %2008 = vmatpush1.msra.mxu0 0.0
    %2009 = vmatprep.subr.mxu0 0.0
    %2010 = vmatpush1.msra.mxu0 0.0
    %2011 = vmatprep.subr.mxu0 0.0
    %2012 = vmatpush1.msra.mxu0 0.0
    %2013 = vmatprep.subr.mxu0 0.0
    %2014 = vmatpush1.msra.mxu0 0.0
    %2015 = vmatprep.subr.mxu0 0.0
    %2016 = vmatpush1.msra.mxu0 0.0
    %2017 = vmatprep.subr.mxu0 0.0
    %2018 = vmatpush1.msra.mxu0 0.0
    %2019 = vmatprep.subr.mxu0 0.0
    %2020 = vmatpush1.msra.mxu0 0.0
    %2021 = vmatprep.subr.mxu0 0.0
    %2022 = vmatpush1.msra.mxu0 0.0
    %2023 = vmatprep.subr.mxu0 0.0
    %2024 = vmatpush1.msra.mxu0 0.0
    %2025 = vmatprep.subr.mxu0 0.0
    %2026 = vmatpush1.msra.mxu0 0.0
    %2027 = vmatprep.subr.mxu0 0.0
    %2028 = vmatpush1.msra.mxu0 0.0
    %2029 = vmatprep.subr.mxu0 0.0
    %2030 = vmatpush1.msra.mxu0 0.0
    %2031 = vmatprep.mubr.f32.mxu0 0.0
    %2032 = vmatmul.mubr.f32.gmra.mrb[0].mxu0 %v1965
    %v2033 = vpop.f32.mrb[0].mxu0
    %v2034 = vadd.f32 %v1962, %v2033
    %v2035 = vpop.f32.mrb[0].mxu0
    %2036 = vdwg.mxu0
    %v2037 = vmax.f32 %v2034, 0.0
    %v2038 = vld [vmem:[%s9] sm:$0xff]
    %v2039 = vld [vmem:[%s9 + $0x8] sm:$0xff]
    %v2040 = vld [vmem:[%s9 + $0x10] sm:$0xff]
    %v2041 = vld [vmem:[%s9 + $0x18] sm:$0xff]
    %v2042 = vld [vmem:[#allocation9] sm:$0x1]
    %v2044 = vlaneseq
    %v2045 = vshrl.u32 %v2044, 7
    %v2046 = vsub.s32 0, %v2045
    %v2047 = vrot.slane %v2042, %v2046
    %v2050 = vsel %vm187, %v2037, 0
    %2052 = vmatprep.subr.mxu0 0.0
    %2053 = vmatpush1.msra.mxu0 %v2038
    %2054 = vmatprep.subr.mxu0 0.0
    %2055 = vmatpush1.msra.mxu0 %v2039
    %2056 = vmatprep.subr.mxu0 0.0
    %2057 = vmatpush1.msra.mxu0 %v2040
    %2058 = vmatprep.subr.mxu0 0.0
    %2059 = vmatpush1.msra.mxu0 %v2041
    %2060 = vmatprep.subr.mxu0 0.0
    %2061 = vmatpush1.msra.mxu0 0.0
    %2062 = vmatprep.subr.mxu0 0.0
    %2063 = vmatpush1.msra.mxu0 0.0
    %2064 = vmatprep.subr.mxu0 0.0
    %2065 = vmatpush1.msra.mxu0 0.0
    %2066 = vmatprep.subr.mxu0 0.0
    %2067 = vmatpush1.msra.mxu0 0.0
    %2068 = vmatprep.subr.mxu0 0.0
    %2069 = vmatpush1.msra.mxu0 0.0
    %2070 = vmatprep.subr.mxu0 0.0
    %2071 = vmatpush1.msra.mxu0 0.0
    %2072 = vmatprep.subr.mxu0 0.0
    %2073 = vmatpush1.msra.mxu0 0.0
    %2074 = vmatprep.subr.mxu0 0.0
    %2075 = vmatpush1.msra.mxu0 0.0
    %2076 = vmatprep.subr.mxu0 0.0
    %2077 = vmatpush1.msra.mxu0 0.0
    %2078 = vmatprep.subr.mxu0 0.0
    %2079 = vmatpush1.msra.mxu0 0.0
    %2080 = vmatprep.subr.mxu0 0.0
    %2081 = vmatpush1.msra.mxu0 0.0
    %2082 = vmatprep.subr.mxu0 0.0
    %2083 = vmatpush1.msra.mxu0 0.0
    %2084 = vmatprep.subr.mxu0 0.0
    %2085 = vmatpush1.msra.mxu0 0.0
    %2086 = vmatprep.subr.mxu0 0.0
    %2087 = vmatpush1.msra.mxu0 0.0
    %2088 = vmatprep.subr.mxu0 0.0
    %2089 = vmatpush1.msra.mxu0 0.0
    %2090 = vmatprep.subr.mxu0 0.0
    %2091 = vmatpush1.msra.mxu0 0.0
    %2092 = vmatprep.subr.mxu0 0.0
    %2093 = vmatpush1.msra.mxu0 0.0
    %2094 = vmatprep.subr.mxu0 0.0
    %2095 = vmatpush1.msra.mxu0 0.0
    %2096 = vmatprep.subr.mxu0 0.0
    %2097 = vmatpush1.msra.mxu0 0.0
    %2098 = vmatprep.subr.mxu0 0.0
    %2099 = vmatpush1.msra.mxu0 0.0
    %2100 = vmatprep.subr.mxu0 0.0
    %2101 = vmatpush1.msra.mxu0 0.0
    %2102 = vmatprep.subr.mxu0 0.0
    %2103 = vmatpush1.msra.mxu0 0.0
    %2104 = vmatprep.subr.mxu0 0.0
    %2105 = vmatpush1.msra.mxu0 0.0
    %2106 = vmatprep.subr.mxu0 0.0
    %2107 = vmatpush1.msra.mxu0 0.0
    %2108 = vmatprep.subr.mxu0 0.0
    %2109 = vmatpush1.msra.mxu0 0.0
    %2110 = vmatprep.subr.mxu0 0.0
    %2111 = vmatpush1.msra.mxu0 0.0
    %2112 = vmatprep.subr.mxu0 0.0
    %2113 = vmatpush1.msra.mxu0 0.0
    %2114 = vmatprep.subr.mxu0 0.0
    %2115 = vmatpush1.msra.mxu0 0.0
    %2116 = vmatprep.mubr.f32.mxu0 0.0
    %2117 = vmatmul.mubr.f32.gmra.mrb[0].mxu0 %v2050
    %v2118 = vpop.f32.mrb[0].mxu0
    %v2119 = vadd.f32 %v2047, %v2118
    %v2120 = vpop.f32.mrb[0].mxu0
    %2121 = vdwg.mxu0
    %v2122 = vmax.f32 %v2119, 0.0
    %vm2123 = vcmask 74752
    %2124 = vst.msk [vmem:[#allocation11] sm:$0x3] %vm2123, %v2122
    // Predicated region
    $region62: #{predict.1} parent=1 // pred_check
      _
    $region63: #{predict.1} parent=1 // pred_check_branch
      %2126 = sbr.rel (0) target = $region65
    $region64: #{predict.1} parent=1 // pred_region
      %s2128 = ssub.s32 32, 32
      %2129 = vsyncadd [#allocation5], %s2128
      %s2131 = sshll.u32 [#allocation11], 4
      %s2132 = int_to_ptr.vmem [resolvable:$true] %s2131
      %2134 = dma.vmem_to_hbm [thread:$0]  %s2132, 32, %s11, [#allocation5]
    $region65: #{predict.1} parent=1 // pred_fallthru
      _
    // Predicated region
    $region66: #{predict.1} parent=1 // pred_check
      _
    $region67: #{predict.1} parent=1 // pred_check_branch
      %2136 = sbr.rel (0) target = $region69
    $region68: #{predict.1} parent=1 // pred_region
      %2137 = dma.done [#allocation5], 32
    $region69: #{predict.1} parent=1 // pred_fallthru
      _
    %2138 = vsyncpa [#allocation4], 1
    %2139 = vsyncpa [#allocation7], 1
    %2140 = vsyncpa [#allocation10], 1
    %2141 = vsyncpa [#allocation5], 1

</llo_original>
